<compile_context>
chip_gen: v7x
topology: tpu7x:2x2x1
jax: 0.10.0
libtpu: 0.0.40
codegen_flags: <defaults>
</compile_context>

<pallas_src>
import functools

import jax
import jax.numpy as jnp
from jax.experimental import pallas as pl
from jax.experimental.pallas import tpu as pltpu


_VMEM_LIMIT = 32 * 1024 * 1024   # explicit scoped-VMEM budget (safe on v5e/v6e/v7x)
_CONV_TM_MAX = 2048              # lane-dim tile for conv matmul (multiple of 128)
_FC_TB_MAX = 1024                # row tile for the fused FC kernel (multiple of 8)


def _round_up(x, m):
    return ((x + m - 1) // m) * m


# ----------------------------------------------------------------------------
# Kernel 1: fused conv (as matmul) + bias + ReLU + 2x2 max-pool.
# The four cols_* operands are stride-2 im2col matrices, one per position of
# the 2x2 pooling window, so  relu(max_i(w @ cols_i) + b)  is the pooled conv
# (bias is constant over the pool window and ReLU is monotone).
# ----------------------------------------------------------------------------
def _conv_pool_relu_kernel(c00_ref, c01_ref, c10_ref, c11_ref, w_ref, b_ref, o_ref):
    w = w_ref[...]
    # Running max: only `acc` + the current MXU result are live at any time.
    acc = jnp.dot(w, c00_ref[...], preferred_element_type=jnp.float32)
    acc = jnp.maximum(acc, jnp.dot(w, c01_ref[...], preferred_element_type=jnp.float32))
    acc = jnp.maximum(acc, jnp.dot(w, c10_ref[...], preferred_element_type=jnp.float32))
    acc = jnp.maximum(acc, jnp.dot(w, c11_ref[...], preferred_element_type=jnp.float32))
    o_ref[...] = jnp.maximum(acc + b_ref[...], 0.0).astype(o_ref.dtype)


def conv_pool_relu(x_cbhw, w_mat, b_col, kernel_size):
    """maxpool2(relu(conv2d(x, w) + b)) with x in (Cin, B, H, W) layout.

    x_cbhw : (Cin, B, H, W) bf16
    w_mat  : (Cout, Cin*K*K) bf16  (PyTorch (Cout,Cin,K,K) flattened row-major)
    b_col  : (Cout, 1) f32
    returns: (Cout, B, Ho//2, Wo//2) bf16   (channel-first, ready for next im2col)
    """
    Cin, B, H, W = x_cbhw.shape
    K = kernel_size
    Cout, Kdim = w_mat.shape
    assert Kdim == Cin * K * K
    Ho, Wo = H - K + 1, W - K + 1
    Hp, Wp = Ho // 2, Wo // 2
    Mp = B * Hp * Wp

    # Lane-dim tiling: pad M up to a multiple of 128; when there is enough
    # work, split into >= 2 parallel grid steps (keeps both v7x TCs busy and
    # enables double-buffered pipelining), capped at _CONV_TM_MAX.
    Mp128 = _round_up(Mp, 128)
    if Mp128 >= 256:
        tm = min(_CONV_TM_MAX, _round_up(pl.cdiv(Mp128, 2), 128))
    else:
        tm = 128
    grid_m = pl.cdiv(Mp128, tm)
    Mp_pad = grid_m * tm
    pad = Mp_pad - Mp

    # Stride-2 im2col (XLA glue), built directly in matmul layout and padded
    # with zeros to Mp_pad: every grid block reads defined data, and the
    # kernel's output lane dim is a multiple of 128 (unmasked stores).
    # TODO(synk): move this patch gather inside the kernel (review item 1).
    cols = []
    for di in range(2):
        for dj in range(2):
            patches = [
                x_cbhw[:, :, di + ky: di + ky + 2 * Hp: 2,
                             dj + kx: dj + kx + 2 * Wp: 2]     # (Cin, B, Hp, Wp)
                for ky in range(K) for kx in range(K)
            ]
            c = jnp.stack(patches, axis=1).reshape(Kdim, Mp)
            cols.append(jnp.pad(c, ((0, 0), (0, pad))))

    out = pl.pallas_call(
        _conv_pool_relu_kernel,
        out_shape=jax.ShapeDtypeStruct((Cout, Mp_pad), jnp.bfloat16),
        grid=(grid_m,),
        in_specs=[pl.BlockSpec((Kdim, tm), lambda i: (0, i))] * 4
                 + [pl.BlockSpec((Cout, Kdim), lambda i: (0, 0)),
                    pl.BlockSpec((Cout, 1), lambda i: (0, 0))],
        out_specs=pl.BlockSpec((Cout, tm), lambda i: (0, i)),
        compiler_params=pltpu.CompilerParams(
            dimension_semantics=("parallel",),
            vmem_limit_bytes=_VMEM_LIMIT),
    )(cols[0], cols[1], cols[2], cols[3], w_mat, b_col)

    return out[:, :Mp].reshape(Cout, B, Hp, Wp)


# ----------------------------------------------------------------------------
# Kernel 2: fused fc1 -> ReLU -> fc2 -> ReLU -> fc3 -> ReLU.
# All weights stay resident in VMEM; intermediates never hit HBM.  fc1/fc2/fc3
# outputs are zero-padded to 128 lanes (lane-dense vregs, full MXU columns).
# ----------------------------------------------------------------------------
def _fc3_fused_kernel(x_ref, w1_ref, b1_ref, w2_ref, b2_ref, w3_ref, b3_ref, o_ref):
    h = jnp.dot(x_ref[...], w1_ref[...], preferred_element_type=jnp.float32)
    h = jnp.maximum(h + b1_ref[...], 0.0).astype(jnp.bfloat16)
    h = jnp.dot(h, w2_ref[...], preferred_element_type=jnp.float32)
    h = jnp.maximum(h + b2_ref[...], 0.0).astype(jnp.bfloat16)
    h = jnp.dot(h, w3_ref[...], preferred_element_type=jnp.float32)
    # The reference module applies ReLU after fc3 as well -- keep it.
    o_ref[...] = jnp.maximum(h + b3_ref[...], 0.0)


def fc3_fused(x, w1, b1, w2, b2, w3, b3, num_classes):
    B, D = x.shape
    ncp = w3.shape[1]                    # all fc output widths padded to 128
    if B >= 16:
        tb = min(_FC_TB_MAX, _round_up(pl.cdiv(B, 2), 8))   # >= 2 parallel steps
    else:
        tb = B                            # tiny batch: single full-size block
    grid_b = pl.cdiv(B, tb)
    B_pad = grid_b * tb
    if B_pad != B:
        x = jnp.pad(x, ((0, B_pad - B), (0, 0)))             # defined data in all blocks

    out = pl.pallas_call(
        _fc3_fused_kernel,
        out_shape=jax.ShapeDtypeStruct((B_pad, ncp), jnp.float32),
        grid=(grid_b,),
        in_specs=[pl.BlockSpec((tb, D), lambda i: (i, 0)),
                  pl.BlockSpec(w1.shape, lambda i: (0, 0)),
                  pl.BlockSpec(b1.shape, lambda i: (0, 0)),
                  pl.BlockSpec(w2.shape, lambda i: (0, 0)),
                  pl.BlockSpec(b2.shape, lambda i: (0, 0)),
                  pl.BlockSpec(w3.shape, lambda i: (0, 0)),
                  pl.BlockSpec(b3.shape, lambda i: (0, 0))],
        out_specs=pl.BlockSpec((tb, ncp), lambda i: (i, 0)),
        compiler_params=pltpu.CompilerParams(
            dimension_semantics=("parallel",),
            vmem_limit_bytes=_VMEM_LIMIT),
    )(x, w1, b1, w2, b2, w3, b3)
    return out[:B, :num_classes]


# ----------------------------------------------------------------------------
# Parameters (PyTorch-style init) + one-time conversion to kernel layout.
# ----------------------------------------------------------------------------
def init_params(key, num_classes=10):
    ks = jax.random.split(key, 10)

    def uniform(k, shape, fan_in):
        bound = 1.0 / jnp.sqrt(fan_in)
        return jax.random.uniform(k, shape, jnp.float32, -bound, bound)

    return {
        "conv1_w": uniform(ks[0], (6, 1, 5, 5), 1 * 5 * 5),
        "conv1_b": uniform(ks[1], (6,), 1 * 5 * 5),
        "conv2_w": uniform(ks[2], (16, 6, 5, 5), 6 * 5 * 5),
        "conv2_b": uniform(ks[3], (16,), 6 * 5 * 5),
        "fc1_w": uniform(ks[4], (120, 16 * 4 * 4), 16 * 4 * 4),
        "fc1_b": uniform(ks[5], (120,), 16 * 4 * 4),
        "fc2_w": uniform(ks[6], (84, 120), 120),
        "fc2_b": uniform(ks[7], (84,), 120),
        "fc3_w": uniform(ks[8], (num_classes, 84), 84),
        "fc3_b": uniform(ks[9], (num_classes,), 84),
    }


def prepare_params(params, num_classes=10):
    """One-time conversion: matmul layout, bf16 weights, 128-lane padded FCs."""
    def pad_to(a, rows, cols):
        return jnp.pad(a, ((0, rows - a.shape[0]), (0, cols - a.shape[1])))

    c1 = params["conv1_w"]
    c2 = params["conv2_w"]
    w1 = params["fc1_w"].T.astype(jnp.bfloat16)                 # (256, 120)
    w2 = params["fc2_w"].T.astype(jnp.bfloat16)                 # (120, 84)
    w3 = params["fc3_w"].T.astype(jnp.bfloat16)                 # (84, nc)
    b1 = params["fc1_b"].reshape(1, -1).astype(jnp.float32)
    b2 = params["fc2_b"].reshape(1, -1).astype(jnp.float32)
    b3 = params["fc3_b"].reshape(1, -1).astype(jnp.float32)
    h1 = _round_up(w1.shape[1], 128)    # fc1 width 120 -> 128
    h2 = _round_up(w2.shape[1], 128)    # fc2 width  84 -> 128
    ncp = _round_up(num_classes, 128)   # fc3 width  nc -> 128
    return {
        "conv1_w": c1.reshape(c1.shape[0], -1).astype(jnp.bfloat16),   # (6, 25)
        "conv1_b": params["conv1_b"].reshape(-1, 1).astype(jnp.float32),
        "conv2_w": c2.reshape(c2.shape[0], -1).astype(jnp.bfloat16),   # (16, 150)
        "conv2_b": params["conv2_b"].reshape(-1, 1).astype(jnp.float32),
        # Zero padding is inert through ReLU and the following matmul.
        "fc1_w": pad_to(w1, w1.shape[0], h1),                          # (256, 128)
        "fc1_b": pad_to(b1, 1, h1),                                    # (1, 128)
        "fc2_w": pad_to(w2, h1, h2),                                   # (128, 128)
        "fc2_b": pad_to(b2, 1, h2),                                    # (1, 128)
        "fc3_w": pad_to(w3, h2, ncp),                                  # (128, 128)
        "fc3_b": pad_to(b3, 1, ncp),                                   # (1, 128)
    }


# ----------------------------------------------------------------------------
# LeNet-5 forward (3 pallas_calls total)
# ----------------------------------------------------------------------------
def lenet5_forward(kparams, x, num_classes=10):
    # x: (B, 1, 28, 28) float32, NCHW (like PyTorch)
    h = x.transpose(1, 0, 2, 3).astype(jnp.bfloat16)                   # (1, B, 28, 28)
    h = conv_pool_relu(h, kparams["conv1_w"], kparams["conv1_b"], 5)   # (6, B, 12, 12)
    h = conv_pool_relu(h, kparams["conv2_w"], kparams["conv2_b"], 5)   # (16, B, 4, 4)
    B = h.shape[1]
    # (C, B, Hp, Wp) -> (B, C*Hp*Wp): matches torch.flatten(h_NCHW, start_dim=1)
    h = h.transpose(1, 0, 2, 3).reshape(B, -1)                         # (B, 256) bf16
    return fc3_fused(h, kparams["fc1_w"], kparams["fc1_b"],
                     kparams["fc2_w"], kparams["fc2_b"],
                     kparams["fc3_w"], kparams["fc3_b"], num_classes)


if __name__ == "__main__":
    key = jax.random.PRNGKey(0)
    pkey, xkey = jax.random.split(key)
    raw_params = init_params(pkey, num_classes=10)
    kparams = prepare_params(raw_params, num_classes=10)   # one-time layout/dtype conversion

    # LeNet-5 geometry here implies 28x28 single-channel input (fc1 expects 16*4*4).
    x = jax.random.normal(xkey, (2, 1, 28, 28), dtype=jnp.float32)

    fwd = jax.jit(functools.partial(lenet5_forward, num_classes=10))
    out = jax.block_until_ready(fwd(kparams, x))
    assert out.shape == (2, 10)
    assert bool(jnp.all(out >= 0.0))   # reference module ends with ReLU
    print("KERNEL_OK")
</pallas_src>

<mosaic_0001>
module attributes {stable_mosaic.version = 11 : i64} {
  func.func @_conv_pool_relu_kernel(%arg0: i32, %arg1: memref<25x256xbf16, #tpu.memory_space<vmem>>, %arg2: memref<25x256xbf16, #tpu.memory_space<vmem>>, %arg3: memref<25x256xbf16, #tpu.memory_space<vmem>>, %arg4: memref<25x256xbf16, #tpu.memory_space<vmem>>, %arg5: memref<6x25xbf16, #tpu.memory_space<vmem>>, %arg6: memref<6x1xf32, #tpu.memory_space<vmem>>, %arg7: memref<6x256xbf16, #tpu.memory_space<vmem>>) attributes {dimension_semantics = [#tpu.dimension_semantics<parallel>], iteration_bounds = array<i64: 2>, scalar_prefetch = 0 : i64, scratch_operands = 0 : i64, tpu.core_type = #tpu.core_type<tc>, window_params = [{transform_indices = @transform_0, window_bounds = array<i64: 25, 256>}, {transform_indices = @transform_1, window_bounds = array<i64: 25, 256>}, {transform_indices = @transform_2, window_bounds = array<i64: 25, 256>}, {transform_indices = @transform_3, window_bounds = array<i64: 25, 256>}, {pipeline_mode = #tpu.pipeline_mode<synchronous>, transform_indices = @transform_4, window_bounds = array<i64: 6, 25>}, {pipeline_mode = #tpu.pipeline_mode<synchronous>, transform_indices = @transform_5, window_bounds = array<i64: 6, 1>}, {transform_indices = @transform_6, window_bounds = array<i64: 6, 256>}]} {
    %c0 = arith.constant 0 : index
    %c0_0 = arith.constant 0 : index
    %0 = vector.load %arg5[%c0, %c0_0] : memref<6x25xbf16, #tpu.memory_space<vmem>>, vector<6x25xbf16>
    %c0_1 = arith.constant 0 : index
    %c0_2 = arith.constant 0 : index
    %1 = vector.load %arg1[%c0_1, %c0_2] : memref<25x256xbf16, #tpu.memory_space<vmem>>, vector<25x256xbf16>
    %cst = arith.constant dense<0.000000e+00> : vector<6x256xf32>
    %2 = tpu.matmul %0, %1, %cst {dimension_numbers = #tpu.dot_dimension_numbers<[1], [0], [0], [1], [0, 0, 1, 1], [], []>} : vector<6x25xbf16>, vector<25x256xbf16>, vector<6x256xf32> -> vector<6x256xf32>
    %c0_3 = arith.constant 0 : index
    %c0_4 = arith.constant 0 : index
    %3 = vector.load %arg2[%c0_3, %c0_4] : memref<25x256xbf16, #tpu.memory_space<vmem>>, vector<25x256xbf16>
    %cst_5 = arith.constant dense<0.000000e+00> : vector<6x256xf32>
    %4 = tpu.matmul %0, %3, %cst_5 {dimension_numbers = #tpu.dot_dimension_numbers<[1], [0], [0], [1], [0, 0, 1, 1], [], []>} : vector<6x25xbf16>, vector<25x256xbf16>, vector<6x256xf32> -> vector<6x256xf32>
    %5 = arith.maximumf %2, %4 : vector<6x256xf32>
    %c0_6 = arith.constant 0 : index
    %c0_7 = arith.constant 0 : index
    %6 = vector.load %arg3[%c0_6, %c0_7] : memref<25x256xbf16, #tpu.memory_space<vmem>>, vector<25x256xbf16>
    %cst_8 = arith.constant dense<0.000000e+00> : vector<6x256xf32>
    %7 = tpu.matmul %0, %6, %cst_8 {dimension_numbers = #tpu.dot_dimension_numbers<[1], [0], [0], [1], [0, 0, 1, 1], [], []>} : vector<6x25xbf16>, vector<25x256xbf16>, vector<6x256xf32> -> vector<6x256xf32>
    %8 = arith.maximumf %5, %7 : vector<6x256xf32>
    %c0_9 = arith.constant 0 : index
    %c0_10 = arith.constant 0 : index
    %9 = vector.load %arg4[%c0_9, %c0_10] : memref<25x256xbf16, #tpu.memory_space<vmem>>, vector<25x256xbf16>
    %cst_11 = arith.constant dense<0.000000e+00> : vector<6x256xf32>
    %10 = tpu.matmul %0, %9, %cst_11 {dimension_numbers = #tpu.dot_dimension_numbers<[1], [0], [0], [1], [0, 0, 1, 1], [], []>} : vector<6x25xbf16>, vector<25x256xbf16>, vector<6x256xf32> -> vector<6x256xf32>
    %11 = arith.maximumf %8, %10 : vector<6x256xf32>
    %c0_12 = arith.constant 0 : index
    %c0_13 = arith.constant 0 : index
    %12 = vector.load %arg6[%c0_12, %c0_13] : memref<6x1xf32, #tpu.memory_space<vmem>>, vector<6x1xf32>
    %13 = vector.broadcast %12 : vector<6x1xf32> to vector<6x256xf32>
    %14 = arith.addf %11, %13 : vector<6x256xf32>
    %cst_14 = arith.constant 0.000000e+00 : f32
    %15 = vector.broadcast %cst_14 : f32 to vector<6x256xf32>
    %16 = arith.maximumf %14, %15 : vector<6x256xf32>
    %17 = arith.truncf %16 : vector<6x256xf32> to vector<6x256xbf16>
    %c0_15 = arith.constant 0 : index
    %c0_16 = arith.constant 0 : index
    %18 = vector.load %arg7[%c0_15, %c0_16] : memref<6x256xbf16, #tpu.memory_space<vmem>>, vector<6x256xbf16>
    tpu.vector_store %arg7[%c0_15, %c0_16], %17 {strides = array<i32>} : memref<6x256xbf16, #tpu.memory_space<vmem>>, vector<6x256xbf16>,
    return
  }
  func.func @transform_0(%arg0: i32) -> (i32, i32) {
    %c0_i32 = arith.constant 0 : i32
    %c0_i32_0 = arith.constant 0 : i32
    return %c0_i32, %arg0 : i32, i32
  }
  func.func @transform_1(%arg0: i32) -> (i32, i32) {
    %c0_i32 = arith.constant 0 : i32
    %c0_i32_0 = arith.constant 0 : i32
    return %c0_i32, %arg0 : i32, i32
  }
  func.func @transform_2(%arg0: i32) -> (i32, i32) {
    %c0_i32 = arith.constant 0 : i32
    %c0_i32_0 = arith.constant 0 : i32
    return %c0_i32, %arg0 : i32, i32
  }
  func.func @transform_3(%arg0: i32) -> (i32, i32) {
    %c0_i32 = arith.constant 0 : i32
    %c0_i32_0 = arith.constant 0 : i32
    return %c0_i32, %arg0 : i32, i32
  }
  func.func @transform_4(%arg0: i32) -> (i32, i32) {
    %c0_i32 = arith.constant 0 : i32
    %c0_i32_0 = arith.constant 0 : i32
    %c0_i32_1 = arith.constant 0 : i32
    return %c0_i32, %c0_i32_0 : i32, i32
  }
  func.func @transform_5(%arg0: i32) -> (i32, i32) {
    %c0_i32 = arith.constant 0 : i32
    %c0_i32_0 = arith.constant 0 : i32
    %c0_i32_1 = arith.constant 0 : i32
    return %c0_i32, %c0_i32_0 : i32, i32
  }
  func.func @transform_6(%arg0: i32) -> (i32, i32) {
    %c0_i32 = arith.constant 0 : i32
    %c0_i32_0 = arith.constant 0 : i32
    return %c0_i32, %arg0 : i32, i32
  }
}

module attributes {stable_mosaic.version = 11 : i64} {
  func.func @_conv_pool_relu_kernel(%arg0: i32, %arg1: memref<150x128xbf16, #tpu.memory_space<vmem>>, %arg2: memref<150x128xbf16, #tpu.memory_space<vmem>>, %arg3: memref<150x128xbf16, #tpu.memory_space<vmem>>, %arg4: memref<150x128xbf16, #tpu.memory_space<vmem>>, %arg5: memref<16x150xbf16, #tpu.memory_space<vmem>>, %arg6: memref<16x1xf32, #tpu.memory_space<vmem>>, %arg7: memref<16x128xbf16, #tpu.memory_space<vmem>>) attributes {dimension_semantics = [#tpu.dimension_semantics<parallel>], iteration_bounds = array<i64: 1>, scalar_prefetch = 0 : i64, scratch_operands = 0 : i64, tpu.core_type = #tpu.core_type<tc>, window_params = [{transform_indices = @transform_0, window_bounds = array<i64: 150, 128>}, {transform_indices = @transform_1, window_bounds = array<i64: 150, 128>}, {transform_indices = @transform_2, window_bounds = array<i64: 150, 128>}, {transform_indices = @transform_3, window_bounds = array<i64: 150, 128>}, {pipeline_mode = #tpu.pipeline_mode<synchronous>, transform_indices = @transform_4, window_bounds = array<i64: 16, 150>}, {pipeline_mode = #tpu.pipeline_mode<synchronous>, transform_indices = @transform_5, window_bounds = array<i64: 16, 1>}, {transform_indices = @transform_6, window_bounds = array<i64: 16, 128>}]} {
    %c0 = arith.constant 0 : index
    %c0_0 = arith.constant 0 : index
    %0 = vector.load %arg5[%c0, %c0_0] : memref<16x150xbf16, #tpu.memory_space<vmem>>, vector<16x150xbf16>
    %c0_1 = arith.constant 0 : index
    %c0_2 = arith.constant 0 : index
    %1 = vector.load %arg1[%c0_1, %c0_2] : memref<150x128xbf16, #tpu.memory_space<vmem>>, vector<150x128xbf16>
    %cst = arith.constant dense<0.000000e+00> : vector<16x128xf32>
    %2 = tpu.matmul %0, %1, %cst {dimension_numbers = #tpu.dot_dimension_numbers<[1], [0], [0], [1], [0, 0, 1, 1], [], []>} : vector<16x150xbf16>, vector<150x128xbf16>, vector<16x128xf32> -> vector<16x128xf32>
    %c0_3 = arith.constant 0 : index
    %c0_4 = arith.constant 0 : index
    %3 = vector.load %arg2[%c0_3, %c0_4] : memref<150x128xbf16, #tpu.memory_space<vmem>>, vector<150x128xbf16>
    %cst_5 = arith.constant dense<0.000000e+00> : vector<16x128xf32>
    %4 = tpu.matmul %0, %3, %cst_5 {dimension_numbers = #tpu.dot_dimension_numbers<[1], [0], [0], [1], [0, 0, 1, 1], [], []>} : vector<16x150xbf16>, vector<150x128xbf16>, vector<16x128xf32> -> vector<16x128xf32>
    %5 = arith.maximumf %2, %4 : vector<16x128xf32>
    %c0_6 = arith.constant 0 : index
    %c0_7 = arith.constant 0 : index
    %6 = vector.load %arg3[%c0_6, %c0_7] : memref<150x128xbf16, #tpu.memory_space<vmem>>, vector<150x128xbf16>
    %cst_8 = arith.constant dense<0.000000e+00> : vector<16x128xf32>
    %7 = tpu.matmul %0, %6, %cst_8 {dimension_numbers = #tpu.dot_dimension_numbers<[1], [0], [0], [1], [0, 0, 1, 1], [], []>} : vector<16x150xbf16>, vector<150x128xbf16>, vector<16x128xf32> -> vector<16x128xf32>
    %8 = arith.maximumf %5, %7 : vector<16x128xf32>
    %c0_9 = arith.constant 0 : index
    %c0_10 = arith.constant 0 : index
    %9 = vector.load %arg4[%c0_9, %c0_10] : memref<150x128xbf16, #tpu.memory_space<vmem>>, vector<150x128xbf16>
    %cst_11 = arith.constant dense<0.000000e+00> : vector<16x128xf32>
    %10 = tpu.matmul %0, %9, %cst_11 {dimension_numbers = #tpu.dot_dimension_numbers<[1], [0], [0], [1], [0, 0, 1, 1], [], []>} : vector<16x150xbf16>, vector<150x128xbf16>, vector<16x128xf32> -> vector<16x128xf32>
    %11 = arith.maximumf %8, %10 : vector<16x128xf32>
    %c0_12 = arith.constant 0 : index
    %c0_13 = arith.constant 0 : index
    %12 = vector.load %arg6[%c0_12, %c0_13] : memref<16x1xf32, #tpu.memory_space<vmem>>, vector<16x1xf32>
    %13 = vector.broadcast %12 : vector<16x1xf32> to vector<16x128xf32>
    %14 = arith.addf %11, %13 : vector<16x128xf32>
    %cst_14 = arith.constant 0.000000e+00 : f32
    %15 = vector.broadcast %cst_14 : f32 to vector<16x128xf32>
    %16 = arith.maximumf %14, %15 : vector<16x128xf32>
    %17 = arith.truncf %16 : vector<16x128xf32> to vector<16x128xbf16>
    %c0_15 = arith.constant 0 : index
    %c0_16 = arith.constant 0 : index
    %18 = vector.load %arg7[%c0_15, %c0_16] : memref<16x128xbf16, #tpu.memory_space<vmem>>, vector<16x128xbf16>
    tpu.vector_store %arg7[%c0_15, %c0_16], %17 {strides = array<i32>} : memref<16x128xbf16, #tpu.memory_space<vmem>>, vector<16x128xbf16>,
    return
  }
  func.func @transform_0(%arg0: i32) -> (i32, i32) {
    %c0_i32 = arith.constant 0 : i32
    %c0_i32_0 = arith.constant 0 : i32
    return %c0_i32, %arg0 : i32, i32
  }
  func.func @transform_1(%arg0: i32) -> (i32, i32) {
    %c0_i32 = arith.constant 0 : i32
    %c0_i32_0 = arith.constant 0 : i32
    return %c0_i32, %arg0 : i32, i32
  }
  func.func @transform_2(%arg0: i32) -> (i32, i32) {
    %c0_i32 = arith.constant 0 : i32
    %c0_i32_0 = arith.constant 0 : i32
    return %c0_i32, %arg0 : i32, i32
  }
  func.func @transform_3(%arg0: i32) -> (i32, i32) {
    %c0_i32 = arith.constant 0 : i32
    %c0_i32_0 = arith.constant 0 : i32
    return %c0_i32, %arg0 : i32, i32
  }
  func.func @transform_4(%arg0: i32) -> (i32, i32) {
    %c0_i32 = arith.constant 0 : i32
    %c0_i32_0 = arith.constant 0 : i32
    %c0_i32_1 = arith.constant 0 : i32
    return %c0_i32, %c0_i32_0 : i32, i32
  }
  func.func @transform_5(%arg0: i32) -> (i32, i32) {
    %c0_i32 = arith.constant 0 : i32
    %c0_i32_0 = arith.constant 0 : i32
    %c0_i32_1 = arith.constant 0 : i32
    return %c0_i32, %c0_i32_0 : i32, i32
  }
  func.func @transform_6(%arg0: i32) -> (i32, i32) {
    %c0_i32 = arith.constant 0 : i32
    %c0_i32_0 = arith.constant 0 : i32
    return %c0_i32, %arg0 : i32, i32
  }
}

module attributes {stable_mosaic.version = 11 : i64} {
  func.func @_fc3_fused_kernel(%arg0: i32, %arg1: memref<2x256xbf16, #tpu.memory_space<vmem>>, %arg2: memref<256x128xbf16, #tpu.memory_space<vmem>>, %arg3: memref<1x128xf32, #tpu.memory_space<vmem>>, %arg4: memref<128x128xbf16, #tpu.memory_space<vmem>>, %arg5: memref<1x128xf32, #tpu.memory_space<vmem>>, %arg6: memref<128x128xbf16, #tpu.memory_space<vmem>>, %arg7: memref<1x128xf32, #tpu.memory_space<vmem>>, %arg8: memref<2x128xf32, #tpu.memory_space<vmem>>) attributes {dimension_semantics = [#tpu.dimension_semantics<parallel>], iteration_bounds = array<i64: 1>, scalar_prefetch = 0 : i64, scratch_operands = 0 : i64, tpu.core_type = #tpu.core_type<tc>, window_params = [{transform_indices = @transform_0, window_bounds = array<i64: 2, 256>}, {pipeline_mode = #tpu.pipeline_mode<synchronous>, transform_indices = @transform_1, window_bounds = array<i64: 256, 128>}, {pipeline_mode = #tpu.pipeline_mode<synchronous>, transform_indices = @transform_2, window_bounds = array<i64: 1, 128>}, {pipeline_mode = #tpu.pipeline_mode<synchronous>, transform_indices = @transform_3, window_bounds = array<i64: 128, 128>}, {pipeline_mode = #tpu.pipeline_mode<synchronous>, transform_indices = @transform_4, window_bounds = array<i64: 1, 128>}, {pipeline_mode = #tpu.pipeline_mode<synchronous>, transform_indices = @transform_5, window_bounds = array<i64: 128, 128>}, {pipeline_mode = #tpu.pipeline_mode<synchronous>, transform_indices = @transform_6, window_bounds = array<i64: 1, 128>}, {transform_indices = @transform_7, window_bounds = array<i64: 2, 128>}]} {
    %c0 = arith.constant 0 : index
    %c0_0 = arith.constant 0 : index
    %0 = vector.load %arg1[%c0, %c0_0] : memref<2x256xbf16, #tpu.memory_space<vmem>>, vector<2x256xbf16>
    %c0_1 = arith.constant 0 : index
    %c0_2 = arith.constant 0 : index
    %1 = vector.load %arg2[%c0_1, %c0_2] : memref<256x128xbf16, #tpu.memory_space<vmem>>, vector<256x128xbf16>
    %cst = arith.constant dense<0.000000e+00> : vector<2x128xf32>
    %2 = tpu.matmul %0, %1, %cst {dimension_numbers = #tpu.dot_dimension_numbers<[1], [0], [0], [1], [0, 0, 1, 1], [], []>} : vector<2x256xbf16>, vector<256x128xbf16>, vector<2x128xf32> -> vector<2x128xf32>
    %c0_3 = arith.constant 0 : index
    %c0_4 = arith.constant 0 : index
    %3 = vector.load %arg3[%c0_3, %c0_4] : memref<1x128xf32, #tpu.memory_space<vmem>>, vector<1x128xf32>
    %4 = vector.broadcast %3 : vector<1x128xf32> to vector<2x128xf32>
    %5 = arith.addf %2, %4 : vector<2x128xf32>
    %cst_5 = arith.constant 0.000000e+00 : f32
    %6 = vector.broadcast %cst_5 : f32 to vector<2x128xf32>
    %7 = arith.maximumf %5, %6 : vector<2x128xf32>
    %8 = arith.truncf %7 : vector<2x128xf32> to vector<2x128xbf16>
    %c0_6 = arith.constant 0 : index
    %c0_7 = arith.constant 0 : index
    %9 = vector.load %arg4[%c0_6, %c0_7] : memref<128x128xbf16, #tpu.memory_space<vmem>>, vector<128x128xbf16>
    %cst_8 = arith.constant dense<0.000000e+00> : vector<2x128xf32>
    %10 = tpu.matmul %8, %9, %cst_8 {dimension_numbers = #tpu.dot_dimension_numbers<[1], [0], [0], [1], [0, 0, 1, 1], [], []>} : vector<2x128xbf16>, vector<128x128xbf16>, vector<2x128xf32> -> vector<2x128xf32>
    %c0_9 = arith.constant 0 : index
    %c0_10 = arith.constant 0 : index
    %11 = vector.load %arg5[%c0_9, %c0_10] : memref<1x128xf32, #tpu.memory_space<vmem>>, vector<1x128xf32>
    %12 = vector.broadcast %11 : vector<1x128xf32> to vector<2x128xf32>
    %13 = arith.addf %10, %12 : vector<2x128xf32>
    %cst_11 = arith.constant 0.000000e+00 : f32
    %14 = vector.broadcast %cst_11 : f32 to vector<2x128xf32>
    %15 = arith.maximumf %13, %14 : vector<2x128xf32>
    %16 = arith.truncf %15 : vector<2x128xf32> to vector<2x128xbf16>
    %c0_12 = arith.constant 0 : index
    %c0_13 = arith.constant 0 : index
    %17 = vector.load %arg6[%c0_12, %c0_13] : memref<128x128xbf16, #tpu.memory_space<vmem>>, vector<128x128xbf16>
    %cst_14 = arith.constant dense<0.000000e+00> : vector<2x128xf32>
    %18 = tpu.matmul %16, %17, %cst_14 {dimension_numbers = #tpu.dot_dimension_numbers<[1], [0], [0], [1], [0, 0, 1, 1], [], []>} : vector<2x128xbf16>, vector<128x128xbf16>, vector<2x128xf32> -> vector<2x128xf32>
    %c0_15 = arith.constant 0 : index
    %c0_16 = arith.constant 0 : index
    %19 = vector.load %arg7[%c0_15, %c0_16] : memref<1x128xf32, #tpu.memory_space<vmem>>, vector<1x128xf32>
    %20 = vector.broadcast %19 : vector<1x128xf32> to vector<2x128xf32>
    %21 = arith.addf %18, %20 : vector<2x128xf32>
    %cst_17 = arith.constant 0.000000e+00 : f32
    %22 = vector.broadcast %cst_17 : f32 to vector<2x128xf32>
    %23 = arith.maximumf %21, %22 : vector<2x128xf32>
    %c0_18 = arith.constant 0 : index
    %c0_19 = arith.constant 0 : index
    %24 = vector.load %arg8[%c0_18, %c0_19] : memref<2x128xf32, #tpu.memory_space<vmem>>, vector<2x128xf32>
    tpu.vector_store %arg8[%c0_18, %c0_19], %23 {strides = array<i32>} : memref<2x128xf32, #tpu.memory_space<vmem>>, vector<2x128xf32>,
    return
  }
  func.func @transform_0(%arg0: i32) -> (i32, i32) {
    %c0_i32 = arith.constant 0 : i32
    %c0_i32_0 = arith.constant 0 : i32
    return %arg0, %c0_i32 : i32, i32
  }
  func.func @transform_1(%arg0: i32) -> (i32, i32) {
    %c0_i32 = arith.constant 0 : i32
    %c0_i32_0 = arith.constant 0 : i32
    %c0_i32_1 = arith.constant 0 : i32
    return %c0_i32, %c0_i32_0 : i32, i32
  }
  func.func @transform_2(%arg0: i32) -> (i32, i32) {
    %c0_i32 = arith.constant 0 : i32
    %c0_i32_0 = arith.constant 0 : i32
    %c0_i32_1 = arith.constant 0 : i32
    return %c0_i32, %c0_i32_0 : i32, i32
  }
  func.func @transform_3(%arg0: i32) -> (i32, i32) {
    %c0_i32 = arith.constant 0 : i32
    %c0_i32_0 = arith.constant 0 : i32
    %c0_i32_1 = arith.constant 0 : i32
    return %c0_i32, %c0_i32_0 : i32, i32
  }
  func.func @transform_4(%arg0: i32) -> (i32, i32) {
    %c0_i32 = arith.constant 0 : i32
    %c0_i32_0 = arith.constant 0 : i32
    %c0_i32_1 = arith.constant 0 : i32
    return %c0_i32, %c0_i32_0 : i32, i32
  }
  func.func @transform_5(%arg0: i32) -> (i32, i32) {
    %c0_i32 = arith.constant 0 : i32
    %c0_i32_0 = arith.constant 0 : i32
    %c0_i32_1 = arith.constant 0 : i32
    return %c0_i32, %c0_i32_0 : i32, i32
  }
  func.func @transform_6(%arg0: i32) -> (i32, i32) {
    %c0_i32 = arith.constant 0 : i32
    %c0_i32_0 = arith.constant 0 : i32
    %c0_i32_1 = arith.constant 0 : i32
    return %c0_i32, %c0_i32_0 : i32, i32
  }
  func.func @transform_7(%arg0: i32) -> (i32, i32) {
    %c0_i32 = arith.constant 0 : i32
    %c0_i32_0 = arith.constant 0 : i32
    return %arg0, %c0_i32 : i32, i32
  }
}

</mosaic_0001>

<llo_original>
// kernel: lenet5_forward.3
$region0: #{lenet5_forward.3}
  #allocation0 [shape = 'u32[]', space=smem, size = 0x4, offset = 0x4, fixed_abs, tag = 'smem constant byte address 0x4 - core index']
  #allocation1 [shape = 'u32[144,128]{1,0:T(1,128)}', space=vmem, size = 0x12000, scoped, tag = 'internal scratch']
  %s0 = inlined_call_operand.vmem [shape: bf16[25,512], index: 0, kind: input, shape index: {}]
  %s1 = inlined_call_operand.vmem [shape: bf16[25,512], index: 1, kind: input, shape index: {}]
  %s2 = inlined_call_operand.vmem [shape: bf16[25,512], index: 2, kind: input, shape index: {}]
  %s3 = inlined_call_operand.vmem [shape: bf16[25,512], index: 3, kind: input, shape index: {}]
  %s4 = inlined_call_operand.vmem [shape: bf16[6,25], index: 4, kind: input, shape index: {}]
  %s5 = inlined_call_operand.vmem [shape: f32[6,1], index: 5, kind: input, shape index: {}]
  %s6 = inlined_call_operand.vmem [shape: bf16[6,512], index: 6, kind: output, shape index: {}]
  %s7 = sld [smem:[#allocation0]]
  $region209: #{lenet5_forward.3} parent=0
    _
  %s9 = ssub.s32 1, %s7
  %s10 = scalar_select 0, %s9, %s7
  $region1: #{lenet5_forward.3} parent=0
    #allocation2 [shape = 'u8[32768]{0}', space=vmem, size = 0x8000, scoped, tag = 'input window, operand 0']
    #allocation3 [shape = 'u8[32768]{0}', space=vmem, size = 0x8000, scoped, tag = 'input window, operand 1']
    #allocation4 [shape = 'u8[32768]{0}', space=vmem, size = 0x8000, scoped, tag = 'input window, operand 2']
    #allocation5 [shape = 'u8[32768]{0}', space=vmem, size = 0x8000, scoped, tag = 'input window, operand 3']
    loop: start=0, step=1, limit=4
    $region2: #{lenet5_forward.3} parent=1 // loop_pre_header
      _
    $region3: #{lenet5_forward.3} parent=1 // loop_header
      %s12 = sphi 0, %s16
      %p13 = scmp.ge.s32.totalorder %s12, 4
      %s22 = sphi 0, %s24
      %s25 = sphi 0, %s22
      %s26 = sphi 0, %s25
      %s42 = sphi 0, %s26
      %s48 = sphi 0, %s50
      %s51 = sphi 0, %s48
      %s52 = sphi 0, %s51
      %s68 = sphi 0, %s52
      %s74 = sphi 0, %s76
      %s77 = sphi 0, %s74
      %s78 = sphi 0, %s77
      %s94 = sphi 0, %s78
      %s100 = sphi 0, %s102
      %s103 = sphi 0, %s100
      %s104 = sphi 0, %s103
      %s120 = sphi 0, %s104
      %s124 = sphi 0, %s124
      %s126 = sphi 0, %s124
      %s127 = sphi 0, %s126
      %s141 = sphi 0, %s127
      %s145 = sphi 0, %s145
      %s147 = sphi 0, %s145
      %s148 = sphi 0, %s147
      %s162 = sphi 0, %s148
      %s168 = sphi 0, %s170
      %s171 = sphi 0, %s168
      %s172 = sphi 0, %s171
      %s188 = sphi 0, %s172
    $region4: #{lenet5_forward.3} parent=1 // loop_header_branch
      %15 = sbr.rel (%p13) target = $region8
    $region5: #{lenet5_forward.3} parent=1 // loop_body
      %s17 = ssub.s32 %s12, 1
      %s18 = ssub.s32 %s12, 2
      %s19 = sadd.s32 %s12, 1
      %s20 = ssub.s32 %s12, %s19
      %p21 = scmp.eq.s32.totalorder %s20, 0
      %s23 = sadd.s32 %s22, 1
      %s24 = scalar_select %p21, %s22, %s23
      %p27 = pneg %p21
      %p28 = scmp.eq.s32.totalorder %s12, 1
      %p29 = por %p27, %p28
      %p30 = scmp.ne.s32.totalorder %s22, %s25
      %p31 = scmp.eq.s32.totalorder %s12, 0
      %p32 = por %p30, %p31
      %p33 = scmp.ne.s32.totalorder %s22, %s25
      %p34 = scmp.eq.s32.totalorder %s17, 1
      %p35 = por %p33, %p34
      %p36 = scmp.ne.s32.totalorder %s25, %s26
      %p37 = scmp.eq.s32.totalorder %s17, 0
      %p38 = por %p36, %p37
      %p39 = scmp.ne.s32.totalorder %s25, %s26
      %p40 = scmp.eq.s32.totalorder %s18, 1
      %p41 = por %p39, %p40
      %p43 = scmp.ne.s32.totalorder %s26, %s42
      %p44 = scmp.eq.s32.totalorder %s18, 0
      %p45 = por %p43, %p44
      %s46 = ssub.s32 %s12, %s19
      %p47 = scmp.eq.s32.totalorder %s46, 0
      %s49 = sadd.s32 %s48, 1
      %s50 = scalar_select %p47, %s48, %s49
      %p53 = pneg %p47
      %p54 = scmp.eq.s32.totalorder %s12, 1
      %p55 = por %p53, %p54
      %p56 = scmp.ne.s32.totalorder %s48, %s51
      %p57 = scmp.eq.s32.totalorder %s12, 0
      %p58 = por %p56, %p57
      %p59 = scmp.ne.s32.totalorder %s48, %s51
      %p60 = scmp.eq.s32.totalorder %s17, 1
      %p61 = por %p59, %p60
      %p62 = scmp.ne.s32.totalorder %s51, %s52
      %p63 = scmp.eq.s32.totalorder %s17, 0
      %p64 = por %p62, %p63
      %p65 = scmp.ne.s32.totalorder %s51, %s52
      %p66 = scmp.eq.s32.totalorder %s18, 1
      %p67 = por %p65, %p66
      %p69 = scmp.ne.s32.totalorder %s52, %s68
      %p70 = scmp.eq.s32.totalorder %s18, 0
      %p71 = por %p69, %p70
      %s72 = ssub.s32 %s12, %s19
      %p73 = scmp.eq.s32.totalorder %s72, 0
      %s75 = sadd.s32 %s74, 1
      %s76 = scalar_select %p73, %s74, %s75
      %p79 = pneg %p73
      %p80 = scmp.eq.s32.totalorder %s12, 1
      %p81 = por %p79, %p80
      %p82 = scmp.ne.s32.totalorder %s74, %s77
      %p83 = scmp.eq.s32.totalorder %s12, 0
      %p84 = por %p82, %p83
      %p85 = scmp.ne.s32.totalorder %s74, %s77
      %p86 = scmp.eq.s32.totalorder %s17, 1
      %p87 = por %p85, %p86
      %p88 = scmp.ne.s32.totalorder %s77, %s78
      %p89 = scmp.eq.s32.totalorder %s17, 0
      %p90 = por %p88, %p89
      %p91 = scmp.ne.s32.totalorder %s77, %s78
      %p92 = scmp.eq.s32.totalorder %s18, 1
      %p93 = por %p91, %p92
      %p95 = scmp.ne.s32.totalorder %s78, %s94
      %p96 = scmp.eq.s32.totalorder %s18, 0
      %p97 = por %p95, %p96
      %s98 = ssub.s32 %s12, %s19
      %p99 = scmp.eq.s32.totalorder %s98, 0
      %s101 = sadd.s32 %s100, 1
      %s102 = scalar_select %p99, %s100, %s101
      %p105 = pneg %p99
      %p106 = scmp.eq.s32.totalorder %s12, 1
      %p107 = por %p105, %p106
      %p108 = scmp.ne.s32.totalorder %s100, %s103
      %p109 = scmp.eq.s32.totalorder %s12, 0
      %p110 = por %p108, %p109
      %p111 = scmp.ne.s32.totalorder %s100, %s103
      %p112 = scmp.eq.s32.totalorder %s17, 1
      %p113 = por %p111, %p112
      %p114 = scmp.ne.s32.totalorder %s103, %s104
      %p115 = scmp.eq.s32.totalorder %s17, 0
      %p116 = por %p114, %p115
      %p117 = scmp.ne.s32.totalorder %s103, %s104
      %p118 = scmp.eq.s32.totalorder %s18, 1
      %p119 = por %p117, %p118
      %p121 = scmp.ne.s32.totalorder %s104, %s120
      %p122 = scmp.eq.s32.totalorder %s18, 0
      %p123 = por %p121, %p122
      %s125 = sadd.s32 %s124, 1
      %p128 = scmp.eq.s32.totalorder %s12, 1
      %p129 = scmp.ne.s32.totalorder %s124, %s126
      %p130 = scmp.eq.s32.totalorder %s12, 0
      %p131 = por %p129, %p130
      %p132 = scmp.ne.s32.totalorder %s124, %s126
      %p133 = scmp.eq.s32.totalorder %s17, 1
      %p134 = por %p132, %p133
      %p135 = scmp.ne.s32.totalorder %s126, %s127
      %p136 = scmp.eq.s32.totalorder %s17, 0
      %p137 = por %p135, %p136
      %p138 = scmp.ne.s32.totalorder %s126, %s127
      %p139 = scmp.eq.s32.totalorder %s18, 1
      %p140 = por %p138, %p139
      %p142 = scmp.ne.s32.totalorder %s127, %s141
      %p143 = scmp.eq.s32.totalorder %s18, 0
      %p144 = por %p142, %p143
      %s146 = sadd.s32 %s145, 1
      %p149 = scmp.eq.s32.totalorder %s12, 1
      %p150 = scmp.ne.s32.totalorder %s145, %s147
      %p151 = scmp.eq.s32.totalorder %s12, 0
      %p152 = por %p150, %p151
      %p153 = scmp.ne.s32.totalorder %s145, %s147
      %p154 = scmp.eq.s32.totalorder %s17, 1
      %p155 = por %p153, %p154
      %p156 = scmp.ne.s32.totalorder %s147, %s148
      %p157 = scmp.eq.s32.totalorder %s17, 0
      %p158 = por %p156, %p157
      %p159 = scmp.ne.s32.totalorder %s147, %s148
      %p160 = scmp.eq.s32.totalorder %s18, 1
      %p161 = por %p159, %p160
      %p163 = scmp.ne.s32.totalorder %s148, %s162
      %p164 = scmp.eq.s32.totalorder %s18, 0
      %p165 = por %p163, %p164
      %s166 = ssub.s32 %s12, %s19
      %p167 = scmp.eq.s32.totalorder %s166, 0
      %s169 = sadd.s32 %s168, 1
      %s170 = scalar_select %p167, %s168, %s169
      %p173 = pneg %p167
      %p174 = scmp.eq.s32.totalorder %s12, 1
      %p175 = por %p173, %p174
      %p176 = scmp.ne.s32.totalorder %s168, %s171
      %p177 = scmp.eq.s32.totalorder %s12, 0
      %p178 = por %p176, %p177
      %p179 = scmp.ne.s32.totalorder %s168, %s171
      %p180 = scmp.eq.s32.totalorder %s17, 1
      %p181 = por %p179, %p180
      %p182 = scmp.ne.s32.totalorder %s171, %s172
      %p183 = scmp.eq.s32.totalorder %s17, 0
      %p184 = por %p182, %p183
      %p185 = scmp.ne.s32.totalorder %s171, %s172
      %p186 = scmp.eq.s32.totalorder %s18, 1
      %p187 = por %p185, %p186
      %p189 = scmp.ne.s32.totalorder %s172, %s188
      %p190 = scmp.eq.s32.totalorder %s18, 0
      %p191 = por %p189, %p190
      %p192 = scmp.le.s32.totalorder 1, %s12
      %p193 = scmp.lt.s32.totalorder %s12, 3
      %p194 = pnand %p192, %p193
      %p195 = pneg %p194
      // Predicated region
      $region9: #{lenet5_forward.3} parent=5 // pred_check
        _
      $region10: #{lenet5_forward.3} parent=5 // pred_check_branch
        %197 = sbr.rel (%p194) target = $region12
      $region11: #{lenet5_forward.3} parent=5 // pred_region
        %s198 = ssub.s32 %s12, 1
        // Predicated region
        $region13: #{lenet5_forward.3} parent=11 // pred_check
          %p199 = pneg %p137
        $region14: #{lenet5_forward.3} parent=11 // pred_check_branch
          %201 = sbr.rel (%p199) target = $region16
        $region15: #{lenet5_forward.3} parent=11 // pred_region
          _
        $region16: #{lenet5_forward.3} parent=11 // pred_fallthru
          _
        // Predicated region
        $region17: #{lenet5_forward.3} parent=11 // pred_check
          %p202 = pneg %p158
        $region18: #{lenet5_forward.3} parent=11 // pred_check_branch
          %204 = sbr.rel (%p202) target = $region20
        $region19: #{lenet5_forward.3} parent=11 // pred_region
          _
        $region20: #{lenet5_forward.3} parent=11 // pred_fallthru
          _
      $region12: #{lenet5_forward.3} parent=5 // pred_fallthru
        _
      %p205 = scmp.lt.s32.totalorder %s12, 2
      // Predicated region
      $region21: #{lenet5_forward.3} parent=5 // pred_check
        %p206 = pneg %p205
      $region22: #{lenet5_forward.3} parent=5 // pred_check_branch
        %208 = sbr.rel (%p206) target = $region24
      $region23: #{lenet5_forward.3} parent=5 // pred_region
        // Predicated region
        $region25: #{lenet5_forward.3} parent=23 // pred_check
          %p209 = pneg %p32
        $region26: #{lenet5_forward.3} parent=23 // pred_check_branch
          %211 = sbr.rel (%p209) target = $region28
        $region27: #{lenet5_forward.3} parent=23 // pred_region
          %s212 = sand.u32 %s22, 1
          %s213 = sand.u32 %s22, 1
          %s214 = smul.addr %s213, 32
          %s215 = scalar_lea.vmem [#allocation2], %s214
          %s216 = smul.u32 2, %s12
          %s217 = smul.addr %s216, 4
          %s218 = scalar_lea.vmem %s0, %s217
          // Predicated region
          $region29: #{lenet5_forward.3} parent=27 // pred_check
            _
          $region30: #{lenet5_forward.3} parent=27 // pred_check_branch
            %220 = sbr.rel (0) target = $region32
          $region31: #{lenet5_forward.3} parent=27 // pred_region
            // Predicated region
            $region33: #{lenet5_forward.3} parent=31 // pred_check
              _
            $region34: #{lenet5_forward.3} parent=31 // pred_check_branch
              %222 = sbr.rel (0) target = $region36
            $region35: #{lenet5_forward.3} parent=31 // pred_region
              // Predicated region
              $region48: #{lenet5_forward.3} parent=35 // pred_check
                _
              $region49: #{lenet5_forward.3} parent=35 // pred_check_branch
                %243 = sbr.rel (0) target = $region51
              $region50: #{lenet5_forward.3} parent=35 // pred_region
                loop: start=0, step=1, limit=1
                $region52: #{lenet5_forward.3} parent=50 // loop_pre_header
                  _
                $region53: #{lenet5_forward.3} parent=50 // loop_header
                  %s245 = sphi 0, %s249
                  %p246 = scmp.ge.s32.totalorder %s245, 1
                  %s250 = sphi %s218, %s218
                  %s251 = sphi %s215, %s215
                $region54: #{lenet5_forward.3} parent=50 // loop_header_branch
                  %248 = sbr.rel (%p246) target = $region58
                $region55: #{lenet5_forward.3} parent=50 // loop_body
                  %v252 = vld [vmem:[%s250] sm:$0xff]
                  %253 = vst [vmem:[%s251] sm:$0xff] %v252
                  %v254 = vld [vmem:[%s250 + $0x10] sm:$0xff]
                  %255 = vst [vmem:[%s251 + $0x8] sm:$0xff] %v254
                  %v256 = vld [vmem:[%s250 + $0x20] sm:$0xff]
                  %257 = vst [vmem:[%s251 + $0x10] sm:$0xff] %v256
                  %v258 = vld [vmem:[%s250 + $0x30] sm:$0xff]
                  %259 = vst [vmem:[%s251 + $0x18] sm:$0xff] %v258
                $region56: #{lenet5_forward.3} parent=50 // loop_footer
                  %s249 = sadd.s32 1, %s245
                $region57: #{lenet5_forward.3} parent=50 // loop_footer_branch
                  %244 = sbr.rel target = $region53
                $region58: #{lenet5_forward.3} parent=50 // loop_exit
                  _
              $region51: #{lenet5_forward.3} parent=35 // pred_fallthru
                _
              // Predicated region
              $region59: #{lenet5_forward.3} parent=35 // pred_check
                _
              $region60: #{lenet5_forward.3} parent=35 // pred_check_branch
                %261 = sbr.rel target = $region62
              $region61: #{lenet5_forward.3} parent=35 // pred_region
                _
              $region62: #{lenet5_forward.3} parent=35 // pred_fallthru
                _
            $region36: #{lenet5_forward.3} parent=31 // pred_fallthru
              _
            // Predicated region
            $region37: #{lenet5_forward.3} parent=31 // pred_check
              _
            $region38: #{lenet5_forward.3} parent=31 // pred_check_branch
              %224 = sbr.rel target = $region40
            $region39: #{lenet5_forward.3} parent=31 // pred_region
              loop: start=0, step=1, limit=1
              $region41: #{lenet5_forward.3} parent=39 // loop_pre_header
                _
              $region42: #{lenet5_forward.3} parent=39 // loop_header
                %s227 = sphi 0, %s231
                %p228 = scmp.ge.s32.totalorder %s227, 1
                %s232 = sphi %s218, %s218
                %s233 = sphi %s215, %s215
              $region43: #{lenet5_forward.3} parent=39 // loop_header_branch
                %230 = sbr.rel (%p228) target = $region47
              $region44: #{lenet5_forward.3} parent=39 // loop_body
                %v234 = vld [vmem:[%s232] sm:$0xff]
                %235 = vst [vmem:[%s233] sm:$0xff] %v234
                %v236 = vld [vmem:[%s232 + $0x10] sm:$0xff]
                %237 = vst [vmem:[%s233 + $0x8] sm:$0xff] %v236
                %v238 = vld [vmem:[%s232 + $0x20] sm:$0xff]
                %239 = vst [vmem:[%s233 + $0x10] sm:$0xff] %v238
                %v240 = vld [vmem:[%s232 + $0x30] sm:$0xff]
                %241 = vst [vmem:[%s233 + $0x18] sm:$0xff] %v240
              $region45: #{lenet5_forward.3} parent=39 // loop_footer
                %s231 = sadd.s32 1, %s227
              $region46: #{lenet5_forward.3} parent=39 // loop_footer_branch
                %226 = sbr.rel target = $region42
              $region47: #{lenet5_forward.3} parent=39 // loop_exit
                _
            $region40: #{lenet5_forward.3} parent=31 // pred_fallthru
              _
          $region32: #{lenet5_forward.3} parent=27 // pred_fallthru
            _
          %262 = vnop
        $region28: #{lenet5_forward.3} parent=23 // pred_fallthru
          _
        // Predicated region
        $region63: #{lenet5_forward.3} parent=23 // pred_check
          %p263 = pneg %p58
        $region64: #{lenet5_forward.3} parent=23 // pred_check_branch
          %265 = sbr.rel (%p263) target = $region66
        $region65: #{lenet5_forward.3} parent=23 // pred_region
          %s266 = sand.u32 %s48, 1
          %s267 = sand.u32 %s48, 1
          %s268 = smul.addr %s267, 32
          %s269 = scalar_lea.vmem [#allocation3], %s268
          %s270 = smul.u32 2, %s12
          %s271 = smul.addr %s270, 4
          %s272 = scalar_lea.vmem %s1, %s271
          // Predicated region
          $region67: #{lenet5_forward.3} parent=65 // pred_check
            _
          $region68: #{lenet5_forward.3} parent=65 // pred_check_branch
            %274 = sbr.rel (0) target = $region70
          $region69: #{lenet5_forward.3} parent=65 // pred_region
            // Predicated region
            $region71: #{lenet5_forward.3} parent=69 // pred_check
              _
            $region72: #{lenet5_forward.3} parent=69 // pred_check_branch
              %276 = sbr.rel (0) target = $region74
            $region73: #{lenet5_forward.3} parent=69 // pred_region
              // Predicated region
              $region86: #{lenet5_forward.3} parent=73 // pred_check
                _
              $region87: #{lenet5_forward.3} parent=73 // pred_check_branch
                %297 = sbr.rel (0) target = $region89
              $region88: #{lenet5_forward.3} parent=73 // pred_region
                loop: start=0, step=1, limit=1
                $region90: #{lenet5_forward.3} parent=88 // loop_pre_header
                  _
                $region91: #{lenet5_forward.3} parent=88 // loop_header
                  %s299 = sphi 0, %s303
                  %p300 = scmp.ge.s32.totalorder %s299, 1
                  %s304 = sphi %s272, %s272
                  %s305 = sphi %s269, %s269
                $region92: #{lenet5_forward.3} parent=88 // loop_header_branch
                  %302 = sbr.rel (%p300) target = $region96
                $region93: #{lenet5_forward.3} parent=88 // loop_body
                  %v306 = vld [vmem:[%s304] sm:$0xff]
                  %307 = vst [vmem:[%s305] sm:$0xff] %v306
                  %v308 = vld [vmem:[%s304 + $0x10] sm:$0xff]
                  %309 = vst [vmem:[%s305 + $0x8] sm:$0xff] %v308
                  %v310 = vld [vmem:[%s304 + $0x20] sm:$0xff]
                  %311 = vst [vmem:[%s305 + $0x10] sm:$0xff] %v310
                  %v312 = vld [vmem:[%s304 + $0x30] sm:$0xff]
                  %313 = vst [vmem:[%s305 + $0x18] sm:$0xff] %v312
                $region94: #{lenet5_forward.3} parent=88 // loop_footer
                  %s303 = sadd.s32 1, %s299
                $region95: #{lenet5_forward.3} parent=88 // loop_footer_branch
                  %298 = sbr.rel target = $region91
                $region96: #{lenet5_forward.3} parent=88 // loop_exit
                  _
              $region89: #{lenet5_forward.3} parent=73 // pred_fallthru
                _
              // Predicated region
              $region97: #{lenet5_forward.3} parent=73 // pred_check
                _
              $region98: #{lenet5_forward.3} parent=73 // pred_check_branch
                %315 = sbr.rel target = $region100
              $region99: #{lenet5_forward.3} parent=73 // pred_region
                _
              $region100: #{lenet5_forward.3} parent=73 // pred_fallthru
                _
            $region74: #{lenet5_forward.3} parent=69 // pred_fallthru
              _
            // Predicated region
            $region75: #{lenet5_forward.3} parent=69 // pred_check
              _
            $region76: #{lenet5_forward.3} parent=69 // pred_check_branch
              %278 = sbr.rel target = $region78
            $region77: #{lenet5_forward.3} parent=69 // pred_region
              loop: start=0, step=1, limit=1
              $region79: #{lenet5_forward.3} parent=77 // loop_pre_header
                _
              $region80: #{lenet5_forward.3} parent=77 // loop_header
                %s281 = sphi 0, %s285
                %p282 = scmp.ge.s32.totalorder %s281, 1
                %s286 = sphi %s272, %s272
                %s287 = sphi %s269, %s269
              $region81: #{lenet5_forward.3} parent=77 // loop_header_branch
                %284 = sbr.rel (%p282) target = $region85
              $region82: #{lenet5_forward.3} parent=77 // loop_body
                %v288 = vld [vmem:[%s286] sm:$0xff]
                %289 = vst [vmem:[%s287] sm:$0xff] %v288
                %v290 = vld [vmem:[%s286 + $0x10] sm:$0xff]
                %291 = vst [vmem:[%s287 + $0x8] sm:$0xff] %v290
                %v292 = vld [vmem:[%s286 + $0x20] sm:$0xff]
                %293 = vst [vmem:[%s287 + $0x10] sm:$0xff] %v292
                %v294 = vld [vmem:[%s286 + $0x30] sm:$0xff]
                %295 = vst [vmem:[%s287 + $0x18] sm:$0xff] %v294
              $region83: #{lenet5_forward.3} parent=77 // loop_footer
                %s285 = sadd.s32 1, %s281
              $region84: #{lenet5_forward.3} parent=77 // loop_footer_branch
                %280 = sbr.rel target = $region80
              $region85: #{lenet5_forward.3} parent=77 // loop_exit
                _
            $region78: #{lenet5_forward.3} parent=69 // pred_fallthru
              _
          $region70: #{lenet5_forward.3} parent=65 // pred_fallthru
            _
          %316 = vnop
        $region66: #{lenet5_forward.3} parent=23 // pred_fallthru
          _
        // Predicated region
        $region101: #{lenet5_forward.3} parent=23 // pred_check
          %p317 = pneg %p84
        $region102: #{lenet5_forward.3} parent=23 // pred_check_branch
          %319 = sbr.rel (%p317) target = $region104
        $region103: #{lenet5_forward.3} parent=23 // pred_region
          %s320 = sand.u32 %s74, 1
          %s321 = sand.u32 %s74, 1
          %s322 = smul.addr %s321, 32
          %s323 = scalar_lea.vmem [#allocation4], %s322
          %s324 = smul.u32 2, %s12
          %s325 = smul.addr %s324, 4
          %s326 = scalar_lea.vmem %s2, %s325
          // Predicated region
          $region105: #{lenet5_forward.3} parent=103 // pred_check
            _
          $region106: #{lenet5_forward.3} parent=103 // pred_check_branch
            %328 = sbr.rel (0) target = $region108
          $region107: #{lenet5_forward.3} parent=103 // pred_region
            // Predicated region
            $region109: #{lenet5_forward.3} parent=107 // pred_check
              _
            $region110: #{lenet5_forward.3} parent=107 // pred_check_branch
              %330 = sbr.rel (0) target = $region112
            $region111: #{lenet5_forward.3} parent=107 // pred_region
              // Predicated region
              $region124: #{lenet5_forward.3} parent=111 // pred_check
                _
              $region125: #{lenet5_forward.3} parent=111 // pred_check_branch
                %351 = sbr.rel (0) target = $region127
              $region126: #{lenet5_forward.3} parent=111 // pred_region
                loop: start=0, step=1, limit=1
                $region128: #{lenet5_forward.3} parent=126 // loop_pre_header
                  _
                $region129: #{lenet5_forward.3} parent=126 // loop_header
                  %s353 = sphi 0, %s357
                  %p354 = scmp.ge.s32.totalorder %s353, 1
                  %s358 = sphi %s326, %s326
                  %s359 = sphi %s323, %s323
                $region130: #{lenet5_forward.3} parent=126 // loop_header_branch
                  %356 = sbr.rel (%p354) target = $region134
                $region131: #{lenet5_forward.3} parent=126 // loop_body
                  %v360 = vld [vmem:[%s358] sm:$0xff]
                  %361 = vst [vmem:[%s359] sm:$0xff] %v360
                  %v362 = vld [vmem:[%s358 + $0x10] sm:$0xff]
                  %363 = vst [vmem:[%s359 + $0x8] sm:$0xff] %v362
                  %v364 = vld [vmem:[%s358 + $0x20] sm:$0xff]
                  %365 = vst [vmem:[%s359 + $0x10] sm:$0xff] %v364
                  %v366 = vld [vmem:[%s358 + $0x30] sm:$0xff]
                  %367 = vst [vmem:[%s359 + $0x18] sm:$0xff] %v366
                $region132: #{lenet5_forward.3} parent=126 // loop_footer
                  %s357 = sadd.s32 1, %s353
                $region133: #{lenet5_forward.3} parent=126 // loop_footer_branch
                  %352 = sbr.rel target = $region129
                $region134: #{lenet5_forward.3} parent=126 // loop_exit
                  _
              $region127: #{lenet5_forward.3} parent=111 // pred_fallthru
                _
              // Predicated region
              $region135: #{lenet5_forward.3} parent=111 // pred_check
                _
              $region136: #{lenet5_forward.3} parent=111 // pred_check_branch
                %369 = sbr.rel target = $region138
              $region137: #{lenet5_forward.3} parent=111 // pred_region
                _
              $region138: #{lenet5_forward.3} parent=111 // pred_fallthru
                _
            $region112: #{lenet5_forward.3} parent=107 // pred_fallthru
              _
            // Predicated region
            $region113: #{lenet5_forward.3} parent=107 // pred_check
              _
            $region114: #{lenet5_forward.3} parent=107 // pred_check_branch
              %332 = sbr.rel target = $region116
            $region115: #{lenet5_forward.3} parent=107 // pred_region
              loop: start=0, step=1, limit=1
              $region117: #{lenet5_forward.3} parent=115 // loop_pre_header
                _
              $region118: #{lenet5_forward.3} parent=115 // loop_header
                %s335 = sphi 0, %s339
                %p336 = scmp.ge.s32.totalorder %s335, 1
                %s340 = sphi %s326, %s326
                %s341 = sphi %s323, %s323
              $region119: #{lenet5_forward.3} parent=115 // loop_header_branch
                %338 = sbr.rel (%p336) target = $region123
              $region120: #{lenet5_forward.3} parent=115 // loop_body
                %v342 = vld [vmem:[%s340] sm:$0xff]
                %343 = vst [vmem:[%s341] sm:$0xff] %v342
                %v344 = vld [vmem:[%s340 + $0x10] sm:$0xff]
                %345 = vst [vmem:[%s341 + $0x8] sm:$0xff] %v344
                %v346 = vld [vmem:[%s340 + $0x20] sm:$0xff]
                %347 = vst [vmem:[%s341 + $0x10] sm:$0xff] %v346
                %v348 = vld [vmem:[%s340 + $0x30] sm:$0xff]
                %349 = vst [vmem:[%s341 + $0x18] sm:$0xff] %v348
              $region121: #{lenet5_forward.3} parent=115 // loop_footer
                %s339 = sadd.s32 1, %s335
              $region122: #{lenet5_forward.3} parent=115 // loop_footer_branch
                %334 = sbr.rel target = $region118
              $region123: #{lenet5_forward.3} parent=115 // loop_exit
                _
            $region116: #{lenet5_forward.3} parent=107 // pred_fallthru
              _
          $region108: #{lenet5_forward.3} parent=103 // pred_fallthru
            _
          %370 = vnop
        $region104: #{lenet5_forward.3} parent=23 // pred_fallthru
          _
        // Predicated region
        $region139: #{lenet5_forward.3} parent=23 // pred_check
          %p371 = pneg %p110
        $region140: #{lenet5_forward.3} parent=23 // pred_check_branch
          %373 = sbr.rel (%p371) target = $region142
        $region141: #{lenet5_forward.3} parent=23 // pred_region
          %s374 = sand.u32 %s100, 1
          %s375 = sand.u32 %s100, 1
          %s376 = smul.addr %s375, 32
          %s377 = scalar_lea.vmem [#allocation5], %s376
          %s378 = smul.u32 2, %s12
          %s379 = smul.addr %s378, 4
          %s380 = scalar_lea.vmem %s3, %s379
          // Predicated region
          $region143: #{lenet5_forward.3} parent=141 // pred_check
            _
          $region144: #{lenet5_forward.3} parent=141 // pred_check_branch
            %382 = sbr.rel (0) target = $region146
          $region145: #{lenet5_forward.3} parent=141 // pred_region
            // Predicated region
            $region147: #{lenet5_forward.3} parent=145 // pred_check
              _
            $region148: #{lenet5_forward.3} parent=145 // pred_check_branch
              %384 = sbr.rel (0) target = $region150
            $region149: #{lenet5_forward.3} parent=145 // pred_region
              // Predicated region
              $region162: #{lenet5_forward.3} parent=149 // pred_check
                _
              $region163: #{lenet5_forward.3} parent=149 // pred_check_branch
                %405 = sbr.rel (0) target = $region165
              $region164: #{lenet5_forward.3} parent=149 // pred_region
                loop: start=0, step=1, limit=1
                $region166: #{lenet5_forward.3} parent=164 // loop_pre_header
                  _
                $region167: #{lenet5_forward.3} parent=164 // loop_header
                  %s407 = sphi 0, %s411
                  %p408 = scmp.ge.s32.totalorder %s407, 1
                  %s412 = sphi %s380, %s380
                  %s413 = sphi %s377, %s377
                $region168: #{lenet5_forward.3} parent=164 // loop_header_branch
                  %410 = sbr.rel (%p408) target = $region172
                $region169: #{lenet5_forward.3} parent=164 // loop_body
                  %v414 = vld [vmem:[%s412] sm:$0xff]
                  %415 = vst [vmem:[%s413] sm:$0xff] %v414
                  %v416 = vld [vmem:[%s412 + $0x10] sm:$0xff]
                  %417 = vst [vmem:[%s413 + $0x8] sm:$0xff] %v416
                  %v418 = vld [vmem:[%s412 + $0x20] sm:$0xff]
                  %419 = vst [vmem:[%s413 + $0x10] sm:$0xff] %v418
                  %v420 = vld [vmem:[%s412 + $0x30] sm:$0xff]
                  %421 = vst [vmem:[%s413 + $0x18] sm:$0xff] %v420
                $region170: #{lenet5_forward.3} parent=164 // loop_footer
                  %s411 = sadd.s32 1, %s407
                $region171: #{lenet5_forward.3} parent=164 // loop_footer_branch
                  %406 = sbr.rel target = $region167
                $region172: #{lenet5_forward.3} parent=164 // loop_exit
                  _
              $region165: #{lenet5_forward.3} parent=149 // pred_fallthru
                _
              // Predicated region
              $region173: #{lenet5_forward.3} parent=149 // pred_check
                _
              $region174: #{lenet5_forward.3} parent=149 // pred_check_branch
                %423 = sbr.rel target = $region176
              $region175: #{lenet5_forward.3} parent=149 // pred_region
                _
              $region176: #{lenet5_forward.3} parent=149 // pred_fallthru
                _
            $region150: #{lenet5_forward.3} parent=145 // pred_fallthru
              _
            // Predicated region
            $region151: #{lenet5_forward.3} parent=145 // pred_check
              _
            $region152: #{lenet5_forward.3} parent=145 // pred_check_branch
              %386 = sbr.rel target = $region154
            $region153: #{lenet5_forward.3} parent=145 // pred_region
              loop: start=0, step=1, limit=1
              $region155: #{lenet5_forward.3} parent=153 // loop_pre_header
                _
              $region156: #{lenet5_forward.3} parent=153 // loop_header
                %s389 = sphi 0, %s393
                %p390 = scmp.ge.s32.totalorder %s389, 1
                %s394 = sphi %s380, %s380
                %s395 = sphi %s377, %s377
              $region157: #{lenet5_forward.3} parent=153 // loop_header_branch
                %392 = sbr.rel (%p390) target = $region161
              $region158: #{lenet5_forward.3} parent=153 // loop_body
                %v396 = vld [vmem:[%s394] sm:$0xff]
                %397 = vst [vmem:[%s395] sm:$0xff] %v396
                %v398 = vld [vmem:[%s394 + $0x10] sm:$0xff]
                %399 = vst [vmem:[%s395 + $0x8] sm:$0xff] %v398
                %v400 = vld [vmem:[%s394 + $0x20] sm:$0xff]
                %401 = vst [vmem:[%s395 + $0x10] sm:$0xff] %v400
                %v402 = vld [vmem:[%s394 + $0x30] sm:$0xff]
                %403 = vst [vmem:[%s395 + $0x18] sm:$0xff] %v402
              $region159: #{lenet5_forward.3} parent=153 // loop_footer
                %s393 = sadd.s32 1, %s389
              $region160: #{lenet5_forward.3} parent=153 // loop_footer_branch
                %388 = sbr.rel target = $region156
              $region161: #{lenet5_forward.3} parent=153 // loop_exit
                _
            $region154: #{lenet5_forward.3} parent=145 // pred_fallthru
              _
          $region146: #{lenet5_forward.3} parent=141 // pred_fallthru
            _
          %424 = vnop
        $region142: #{lenet5_forward.3} parent=23 // pred_fallthru
          _
      $region24: #{lenet5_forward.3} parent=5 // pred_fallthru
        _
      %p425 = scmp.le.s32.totalorder 1, %s12
      %p426 = scmp.lt.s32.totalorder %s12, 3
      %p427 = pnand %p425, %p426
      %p428 = pneg %p427
      // Predicated region
      $region177: #{lenet5_forward.3} parent=5 // pred_check
        _
      $region178: #{lenet5_forward.3} parent=5 // pred_check_branch
        %430 = sbr.rel (%p427) target = $region180
      $region179: #{lenet5_forward.3} parent=5 // pred_region
        %s431 = ssub.s32 %s12, 1
        %s432 = sand.u32 %s25, 1
        %s433 = sand.u32 %s25, 1
        %s434 = smul.addr %s433, 32
        %s435 = scalar_lea.vmem [#allocation2], %s434
        // Predicated region
        $region181: #{lenet5_forward.3} parent=179 // pred_check
          %p436 = pneg %p38
        $region182: #{lenet5_forward.3} parent=179 // pred_check_branch
          %438 = sbr.rel (%p436) target = $region184
        $region183: #{lenet5_forward.3} parent=179 // pred_region
          _
        $region184: #{lenet5_forward.3} parent=179 // pred_fallthru
          _
        %s439 = sand.u32 %s51, 1
        %s440 = sand.u32 %s51, 1
        %s441 = smul.addr %s440, 32
        %s442 = scalar_lea.vmem [#allocation3], %s441
        // Predicated region
        $region185: #{lenet5_forward.3} parent=179 // pred_check
          %p443 = pneg %p64
        $region186: #{lenet5_forward.3} parent=179 // pred_check_branch
          %445 = sbr.rel (%p443) target = $region188
        $region187: #{lenet5_forward.3} parent=179 // pred_region
          _
        $region188: #{lenet5_forward.3} parent=179 // pred_fallthru
          _
        %s446 = sand.u32 %s77, 1
        %s447 = sand.u32 %s77, 1
        %s448 = smul.addr %s447, 32
        %s449 = scalar_lea.vmem [#allocation4], %s448
        // Predicated region
        $region189: #{lenet5_forward.3} parent=179 // pred_check
          %p450 = pneg %p90
        $region190: #{lenet5_forward.3} parent=179 // pred_check_branch
          %452 = sbr.rel (%p450) target = $region192
        $region191: #{lenet5_forward.3} parent=179 // pred_region
          _
        $region192: #{lenet5_forward.3} parent=179 // pred_fallthru
          _
        %s453 = sand.u32 %s103, 1
        %s454 = sand.u32 %s103, 1
        %s455 = smul.addr %s454, 32
        %s456 = scalar_lea.vmem [#allocation5], %s455
        // Predicated region
        $region193: #{lenet5_forward.3} parent=179 // pred_check
          %p457 = pneg %p116
        $region194: #{lenet5_forward.3} parent=179 // pred_check_branch
          %459 = sbr.rel (%p457) target = $region196
        $region195: #{lenet5_forward.3} parent=179 // pred_region
          _
        $region196: #{lenet5_forward.3} parent=179 // pred_fallthru
          _
        %s460 = sand.u32 %s25, 1
        %s461 = sand.u32 %s25, 1
        %s462 = smul.addr %s461, 32
        %s463 = scalar_lea.vmem [#allocation2], %s462
        %p464 = pneg %p38
        %p465 = pneg %p35
        %s466 = sand.u32 %s51, 1
        %s467 = sand.u32 %s51, 1
        %s468 = smul.addr %s467, 32
        %s469 = scalar_lea.vmem [#allocation3], %s468
        %p470 = pneg %p64
        %p471 = pneg %p61
        %s472 = sand.u32 %s77, 1
        %s473 = sand.u32 %s77, 1
        %s474 = smul.addr %s473, 32
        %s475 = scalar_lea.vmem [#allocation4], %s474
        %p476 = pneg %p90
        %p477 = pneg %p87
        %s478 = sand.u32 %s103, 1
        %s479 = sand.u32 %s103, 1
        %s480 = smul.addr %s479, 32
        %s481 = scalar_lea.vmem [#allocation5], %s480
        %p482 = pneg %p116
        %p483 = pneg %p113
        %p484 = pneg %p137
        %p485 = pneg %p134
        %p486 = pneg %p158
        %p487 = pneg %p155
        %p488 = pneg %p184
        %p489 = pneg %p181
        %s490 = smul.u32 2, %s17
        %p491 = scmp.lt.s32.totalorder %s490, 3
        %s492 = scalar_select %p491, %s490, 3
        %s493 = smul.addr %s492, 4
        %s494 = scalar_lea.vmem %s6, %s493
        %s495 = smul.u32 2, %s17
        %s496 = smul.u32 2, %s17
        %s497 = smul.u32 2, %s17
        %s498 = smul.u32 2, %s17
        %s499 = smul.u32 2, %s17
        %p500 = scmp.lt.s32.totalorder %s499, 3
        %s501 = scalar_select %p500, %s499, 3
        %s502 = smul.addr %s501, 4
        %s503 = scalar_lea.vmem %s6, %s502
        %s504 = smul.u32 2, %s17
        %v506 = vld [vmem:[%s4] sm:$0x7]
        %v507 = vld [vmem:[%s435] sm:$0xff]
        %v508 = vld [vmem:[%s435 + $0x8] sm:$0xff]
        %v509 = vld [vmem:[%s435 + $0x10] sm:$0xff]
        %v510 = vld [vmem:[%s435 + $0x18] sm:$0x11]
        %v515 = vunpack.c.l.b16 %v507
        %v516 = vunpack.c.h.b16 %v507
        %v517 = vunpack.c.l.b16 %v508
        %v518 = vunpack.c.h.b16 %v508
        %v519 = vunpack.c.l.b16 %v509
        %v520 = vunpack.c.h.b16 %v509
        %v521 = vunpack.c.l.b16 %v510
        %v522 = vunpack.c.h.b16 %v510
        %v523 = vpack.c.b16 %v517, %v515
        %v524 = vpack.c.b16 %v518, %v516
        %v525 = vpack.c.b16 %v521, %v519
        %v526 = vpack.c.b16 %v522, %v520
        %vm529 = vcmask 203776
        %v531 = vsel %vm529, %v506, 0
        %vm533 = vcmask 1043456
        %vm534 = vcmask 1044480
        %v535 = vsel %vm533, 4294967295, 65535
        %v536 = vsel %vm534, %v535, 0
        %v538 = vand.u32 %v525, %v536
        %v541 = vand.u32 %v526, %v536
        %543 = vmatprep.subr.bf16.mxu0 %v524
        %544 = vmatpush1.bf16.msra.mxu0 %v523
        %545 = vmatprep.subr.bf16.mxu0 %v541
        %546 = vmatpush1.bf16.msra.mxu0 %v538
        %547 = vmatprep.subr.bf16.mxu0 0
        %548 = vmatpush1.bf16.msra.mxu0 0
        %549 = vmatprep.subr.bf16.mxu0 0
        %550 = vmatpush1.bf16.msra.mxu0 0
        %551 = vmatprep.subr.bf16.mxu0 0
        %552 = vmatpush1.bf16.msra.mxu0 0
        %553 = vmatprep.subr.bf16.mxu0 0
        %554 = vmatpush1.bf16.msra.mxu0 0
        %555 = vmatprep.subr.bf16.mxu0 0
        %556 = vmatpush1.bf16.msra.mxu0 0
        %557 = vmatprep.subr.bf16.mxu0 0
        %558 = vmatpush1.bf16.msra.mxu0 0
        %559 = vmatprep.subr.bf16.mxu0 0
        %560 = vmatpush1.bf16.msra.mxu0 0
        %561 = vmatprep.subr.bf16.mxu0 0
        %562 = vmatpush1.bf16.msra.mxu0 0
        %563 = vmatprep.subr.bf16.mxu0 0
        %564 = vmatpush1.bf16.msra.mxu0 0
        %565 = vmatprep.subr.bf16.mxu0 0
        %566 = vmatpush1.bf16.msra.mxu0 0
        %567 = vmatprep.subr.bf16.mxu0 0
        %568 = vmatpush1.bf16.msra.mxu0 0
        %569 = vmatprep.subr.bf16.mxu0 0
        %570 = vmatpush1.bf16.msra.mxu0 0
        %571 = vmatprep.subr.bf16.mxu0 0
        %572 = vmatpush1.bf16.msra.mxu0 0
        %573 = vmatprep.subr.bf16.mxu0 0
        %574 = vmatpush1.bf16.msra.mxu0 0
        %575 = vmatprep.mubr.bf16.mxu0 0
        %576 = vmatmul.mubr.bf16.gmra.mrb[0].mxu0 %v531
        %v577 = vpop.f32.mrb[0].mxu0
        %v578 = vadd.f32 0.0, %v577
        %v579 = vpop.f32.mrb[0].mxu0
        %v580 = vadd.f32 0.0, %v579
        %v581 = vpop.f32.mrb[0].mxu0
        %v582 = vpop.f32.mrb[0].mxu0
        %583 = vdwg.mxu0
        %v584 = vld [vmem:[%s442] sm:$0xff]
        %v585 = vld [vmem:[%s442 + $0x8] sm:$0xff]
        %v586 = vld [vmem:[%s442 + $0x10] sm:$0xff]
        %v587 = vld [vmem:[%s442 + $0x18] sm:$0x11]
        %v592 = vunpack.c.l.b16 %v584
        %v593 = vunpack.c.h.b16 %v584
        %v594 = vunpack.c.l.b16 %v585
        %v595 = vunpack.c.h.b16 %v585
        %v596 = vunpack.c.l.b16 %v586
        %v597 = vunpack.c.h.b16 %v586
        %v598 = vunpack.c.l.b16 %v587
        %v599 = vunpack.c.h.b16 %v587
        %v600 = vpack.c.b16 %v594, %v592
        %v601 = vpack.c.b16 %v595, %v593
        %v602 = vpack.c.b16 %v598, %v596
        %v603 = vpack.c.b16 %v599, %v597
        %v607 = vand.u32 %v602, %v536
        %v610 = vand.u32 %v603, %v536
        %612 = vmatprep.subr.bf16.mxu0 %v601
        %613 = vmatpush1.bf16.msra.mxu0 %v600
        %614 = vmatprep.subr.bf16.mxu0 %v610
        %615 = vmatpush1.bf16.msra.mxu0 %v607
        %616 = vmatprep.subr.bf16.mxu0 0
        %617 = vmatpush1.bf16.msra.mxu0 0
        %618 = vmatprep.subr.bf16.mxu0 0
        %619 = vmatpush1.bf16.msra.mxu0 0
        %620 = vmatprep.subr.bf16.mxu0 0
        %621 = vmatpush1.bf16.msra.mxu0 0
        %622 = vmatprep.subr.bf16.mxu0 0
        %623 = vmatpush1.bf16.msra.mxu0 0
        %624 = vmatprep.subr.bf16.mxu0 0
        %625 = vmatpush1.bf16.msra.mxu0 0
        %626 = vmatprep.subr.bf16.mxu0 0
        %627 = vmatpush1.bf16.msra.mxu0 0
        %628 = vmatprep.subr.bf16.mxu0 0
        %629 = vmatpush1.bf16.msra.mxu0 0
        %630 = vmatprep.subr.bf16.mxu0 0
        %631 = vmatpush1.bf16.msra.mxu0 0
        %632 = vmatprep.subr.bf16.mxu0 0
        %633 = vmatpush1.bf16.msra.mxu0 0
        %634 = vmatprep.subr.bf16.mxu0 0
        %635 = vmatpush1.bf16.msra.mxu0 0
        %636 = vmatprep.subr.bf16.mxu0 0
        %637 = vmatpush1.bf16.msra.mxu0 0
        %638 = vmatprep.subr.bf16.mxu0 0
        %639 = vmatpush1.bf16.msra.mxu0 0
        %640 = vmatprep.subr.bf16.mxu0 0
        %641 = vmatpush1.bf16.msra.mxu0 0
        %642 = vmatprep.subr.bf16.mxu0 0
        %643 = vmatpush1.bf16.msra.mxu0 0
        %644 = vmatprep.mubr.bf16.mxu0 0
        %645 = vmatmul.mubr.bf16.gmra.mrb[0].mxu0 %v531
        %v646 = vpop.f32.mrb[0].mxu0
        %v647 = vadd.f32 0.0, %v646
        %v648 = vpop.f32.mrb[0].mxu0
        %v649 = vadd.f32 0.0, %v648
        %v650 = vpop.f32.mrb[0].mxu0
        %v651 = vpop.f32.mrb[0].mxu0
        %652 = vdwg.mxu0
        %v653 = vmax.f32 %v578, %v647
        %v654 = vmax.f32 %v580, %v649
        %v655 = vld [vmem:[%s449] sm:$0xff]
        %v656 = vld [vmem:[%s449 + $0x8] sm:$0xff]
        %v657 = vld [vmem:[%s449 + $0x10] sm:$0xff]
        %v658 = vld [vmem:[%s449 + $0x18] sm:$0x11]
        %v663 = vunpack.c.l.b16 %v655
        %v664 = vunpack.c.h.b16 %v655
        %v665 = vunpack.c.l.b16 %v656
        %v666 = vunpack.c.h.b16 %v656
        %v667 = vunpack.c.l.b16 %v657
        %v668 = vunpack.c.h.b16 %v657
        %v669 = vunpack.c.l.b16 %v658
        %v670 = vunpack.c.h.b16 %v658
        %v671 = vpack.c.b16 %v665, %v663
        %v672 = vpack.c.b16 %v666, %v664
        %v673 = vpack.c.b16 %v669, %v667
        %v674 = vpack.c.b16 %v670, %v668
        %v678 = vand.u32 %v673, %v536
        %v681 = vand.u32 %v674, %v536
        %683 = vmatprep.subr.bf16.mxu0 %v672
        %684 = vmatpush1.bf16.msra.mxu0 %v671
        %685 = vmatprep.subr.bf16.mxu0 %v681
        %686 = vmatpush1.bf16.msra.mxu0 %v678
        %687 = vmatprep.subr.bf16.mxu0 0
        %688 = vmatpush1.bf16.msra.mxu0 0
        %689 = vmatprep.subr.bf16.mxu0 0
        %690 = vmatpush1.bf16.msra.mxu0 0
        %691 = vmatprep.subr.bf16.mxu0 0
        %692 = vmatpush1.bf16.msra.mxu0 0
        %693 = vmatprep.subr.bf16.mxu0 0
        %694 = vmatpush1.bf16.msra.mxu0 0
        %695 = vmatprep.subr.bf16.mxu0 0
        %696 = vmatpush1.bf16.msra.mxu0 0
        %697 = vmatprep.subr.bf16.mxu0 0
        %698 = vmatpush1.bf16.msra.mxu0 0
        %699 = vmatprep.subr.bf16.mxu0 0
        %700 = vmatpush1.bf16.msra.mxu0 0
        %701 = vmatprep.subr.bf16.mxu0 0
        %702 = vmatpush1.bf16.msra.mxu0 0
        %703 = vmatprep.subr.bf16.mxu0 0
        %704 = vmatpush1.bf16.msra.mxu0 0
        %705 = vmatprep.subr.bf16.mxu0 0
        %706 = vmatpush1.bf16.msra.mxu0 0
        %707 = vmatprep.subr.bf16.mxu0 0
        %708 = vmatpush1.bf16.msra.mxu0 0
        %709 = vmatprep.subr.bf16.mxu0 0
        %710 = vmatpush1.bf16.msra.mxu0 0
        %711 = vmatprep.subr.bf16.mxu0 0
        %712 = vmatpush1.bf16.msra.mxu0 0
        %713 = vmatprep.subr.bf16.mxu0 0
        %714 = vmatpush1.bf16.msra.mxu0 0
        %715 = vmatprep.mubr.bf16.mxu0 0
        %716 = vmatmul.mubr.bf16.gmra.mrb[0].mxu0 %v531
        %v717 = vpop.f32.mrb[0].mxu0
        %v718 = vadd.f32 0.0, %v717
        %v719 = vpop.f32.mrb[0].mxu0
        %v720 = vadd.f32 0.0, %v719
        %v721 = vpop.f32.mrb[0].mxu0
        %v722 = vpop.f32.mrb[0].mxu0
        %723 = vdwg.mxu0
        %v724 = vmax.f32 %v653, %v718
        %v725 = vmax.f32 %v654, %v720
        %v726 = vld [vmem:[%s456] sm:$0xff]
        %v727 = vld [vmem:[%s456 + $0x8] sm:$0xff]
        %v728 = vld [vmem:[%s456 + $0x10] sm:$0xff]
        %v729 = vld [vmem:[%s456 + $0x18] sm:$0x11]
        %v734 = vunpack.c.l.b16 %v726
        %v735 = vunpack.c.h.b16 %v726
        %v736 = vunpack.c.l.b16 %v727
        %v737 = vunpack.c.h.b16 %v727
        %v738 = vunpack.c.l.b16 %v728
        %v739 = vunpack.c.h.b16 %v728
        %v740 = vunpack.c.l.b16 %v729
        %v741 = vunpack.c.h.b16 %v729
        %v742 = vpack.c.b16 %v736, %v734
        %v743 = vpack.c.b16 %v737, %v735
        %v744 = vpack.c.b16 %v740, %v738
        %v745 = vpack.c.b16 %v741, %v739
        %v749 = vand.u32 %v744, %v536
        %v752 = vand.u32 %v745, %v536
        %754 = vmatprep.subr.bf16.mxu0 %v743
        %755 = vmatpush1.bf16.msra.mxu0 %v742
        %756 = vmatprep.subr.bf16.mxu0 %v752
        %757 = vmatpush1.bf16.msra.mxu0 %v749
        %758 = vmatprep.subr.bf16.mxu0 0
        %759 = vmatpush1.bf16.msra.mxu0 0
        %760 = vmatprep.subr.bf16.mxu0 0
        %761 = vmatpush1.bf16.msra.mxu0 0
        %762 = vmatprep.subr.bf16.mxu0 0
        %763 = vmatpush1.bf16.msra.mxu0 0
        %764 = vmatprep.subr.bf16.mxu0 0
        %765 = vmatpush1.bf16.msra.mxu0 0
        %766 = vmatprep.subr.bf16.mxu0 0
        %767 = vmatpush1.bf16.msra.mxu0 0
        %768 = vmatprep.subr.bf16.mxu0 0
        %769 = vmatpush1.bf16.msra.mxu0 0
        %770 = vmatprep.subr.bf16.mxu0 0
        %771 = vmatpush1.bf16.msra.mxu0 0
        %772 = vmatprep.subr.bf16.mxu0 0
        %773 = vmatpush1.bf16.msra.mxu0 0
        %774 = vmatprep.subr.bf16.mxu0 0
        %775 = vmatpush1.bf16.msra.mxu0 0
        %776 = vmatprep.subr.bf16.mxu0 0
        %777 = vmatpush1.bf16.msra.mxu0 0
        %778 = vmatprep.subr.bf16.mxu0 0
        %779 = vmatpush1.bf16.msra.mxu0 0
        %780 = vmatprep.subr.bf16.mxu0 0
        %781 = vmatpush1.bf16.msra.mxu0 0
        %782 = vmatprep.subr.bf16.mxu0 0
        %783 = vmatpush1.bf16.msra.mxu0 0
        %784 = vmatprep.subr.bf16.mxu0 0
        %785 = vmatpush1.bf16.msra.mxu0 0
        %786 = vmatprep.mubr.bf16.mxu0 0
        %787 = vmatmul.mubr.bf16.gmra.mrb[0].mxu0 %v531
        %v788 = vpop.f32.mrb[0].mxu0
        %v789 = vadd.f32 0.0, %v788
        %v790 = vpop.f32.mrb[0].mxu0
        %v791 = vadd.f32 0.0, %v790
        %v792 = vpop.f32.mrb[0].mxu0
        %v793 = vpop.f32.mrb[0].mxu0
        %794 = vdwg.mxu0
        %v795 = vmax.f32 %v724, %v789
        %v796 = vmax.f32 %v725, %v791
        %v797 = vld [vmem:[%s5] sm:$0x3f]
        %799 = vset.pattern.permute.xlu0 0
        %800 = vperm.xlu0 %799, %v797
        %v801 = vpop.permute.xlu0 %800
        %v803 = vadd.f32 %v795, %v801
        %v804 = vadd.f32 %v796, %v801
        %v805 = vmax.f32 %v803, 0.0
        %v806 = vmax.f32 %v804, 0.0
        %v807 = vpack.c.bf16 %v805, %v805
        %v808 = vpack.c.bf16 %v806, %v806
        %v811 = vunpack.c.l.b16 %v807
        %v812 = vunpack.c.l.b16 %v808
        %v813 = vpack.c.b16 %v812, %v811
        %815 = vst [vmem:[%s503] sm:$0x77] %v813
        %s816 = smul.u32 2, %s17
        %p817 = scmp.lt.s32.totalorder %s816, 3
        %s818 = scalar_select %p817, %s816, 3
        %s819 = smul.addr %s818, 4
        %s820 = scalar_lea.vmem %s6, %s819
        // Predicated region
        $region197: #{lenet5_forward.3} parent=179 // pred_check
          %p821 = pneg %p181
        $region198: #{lenet5_forward.3} parent=179 // pred_check_branch
          %823 = sbr.rel (%p821) target = $region200
        $region199: #{lenet5_forward.3} parent=179 // pred_region
          %s824 = smul.u32 2, %s17
        $region200: #{lenet5_forward.3} parent=179 // pred_fallthru
          _
      $region180: #{lenet5_forward.3} parent=5 // pred_fallthru
        _
      %p825 = scmp.le.s32.totalorder 2, %s12
      // Predicated region
      $region201: #{lenet5_forward.3} parent=5 // pred_check
        %p826 = pneg %p825
      $region202: #{lenet5_forward.3} parent=5 // pred_check_branch
        %828 = sbr.rel (%p826) target = $region204
      $region203: #{lenet5_forward.3} parent=5 // pred_region
        %s829 = ssub.s32 %s12, 2
        // Predicated region
        $region205: #{lenet5_forward.3} parent=203 // pred_check
          %p830 = pneg %p187
        $region206: #{lenet5_forward.3} parent=203 // pred_check_branch
          %832 = sbr.rel (%p830) target = $region208
        $region207: #{lenet5_forward.3} parent=203 // pred_region
          %s833 = smul.u32 2, %s18
          %p834 = scmp.lt.s32.totalorder %s833, 3
          %s835 = scalar_select %p834, %s833, 3
          %s836 = smul.addr %s835, 4
          %s837 = scalar_lea.vmem %s6, %s836
        $region208: #{lenet5_forward.3} parent=203 // pred_fallthru
          _
      $region204: #{lenet5_forward.3} parent=5 // pred_fallthru
        _
    $region6: #{lenet5_forward.3} parent=1 // loop_footer
      %s16 = sadd.s32 1, %s12
    $region7: #{lenet5_forward.3} parent=1 // loop_footer_branch
      %11 = sbr.rel target = $region3
    $region8: #{lenet5_forward.3} parent=1 // loop_exit
      _

// kernel: lenet5_forward.4
$region0: #{lenet5_forward.4}
  #allocation0 [shape = 'u32[]', space=smem, size = 0x4, offset = 0x4, fixed_abs, tag = 'smem constant byte address 0x4 - core index']
  #allocation1 [shape = 'u32[144,128]{1,0:T(1,128)}', space=vmem, size = 0x12000, scoped, tag = 'internal scratch']
  %s0 = inlined_call_operand.vmem [shape: bf16[150,128], index: 0, kind: input, shape index: {}]
  %s1 = inlined_call_operand.vmem [shape: bf16[150,128], index: 1, kind: input, shape index: {}]
  %s2 = inlined_call_operand.vmem [shape: bf16[150,128], index: 2, kind: input, shape index: {}]
  %s3 = inlined_call_operand.vmem [shape: bf16[150,128], index: 3, kind: input, shape index: {}]
  %s4 = inlined_call_operand.vmem [shape: bf16[16,150], index: 4, kind: input, shape index: {}]
  %s5 = inlined_call_operand.vmem [shape: f32[16,1], index: 5, kind: input, shape index: {}]
  %s6 = inlined_call_operand.vmem [shape: bf16[16,128], index: 6, kind: output, shape index: {}]
  %s7 = sld [smem:[#allocation0]]
  $region34: #{lenet5_forward.4} parent=0
    _
  %s9 = ssub.s32 1, %s7
  %s10 = scalar_select 0, %s9, %s7
  // Predicated region
  $region2: #{lenet5_forward.4} parent=0 // pred_check
    _
  $region3: #{lenet5_forward.4} parent=0 // pred_check_branch
    %12 = sbr.rel (0) target = $region5
  $region4: #{lenet5_forward.4} parent=0 // pred_region
    _
  $region5: #{lenet5_forward.4} parent=0 // pred_fallthru
    _
  // Predicated region
  $region6: #{lenet5_forward.4} parent=0 // pred_check
    _
  $region7: #{lenet5_forward.4} parent=0 // pred_check_branch
    %14 = sbr.rel (0) target = $region9
  $region8: #{lenet5_forward.4} parent=0 // pred_region
    _
  $region9: #{lenet5_forward.4} parent=0 // pred_fallthru
    _
  // Predicated region
  $region10: #{lenet5_forward.4} parent=0 // pred_check
    _
  $region11: #{lenet5_forward.4} parent=0 // pred_check_branch
    %16 = sbr.rel (0) target = $region13
  $region12: #{lenet5_forward.4} parent=0 // pred_region
    _
  $region13: #{lenet5_forward.4} parent=0 // pred_fallthru
    _
  // Predicated region
  $region14: #{lenet5_forward.4} parent=0 // pred_check
    _
  $region15: #{lenet5_forward.4} parent=0 // pred_check_branch
    %18 = sbr.rel (0) target = $region17
  $region16: #{lenet5_forward.4} parent=0 // pred_region
    _
  $region17: #{lenet5_forward.4} parent=0 // pred_fallthru
    _
  // Predicated region
  $region18: #{lenet5_forward.4} parent=0 // pred_check
    _
  $region19: #{lenet5_forward.4} parent=0 // pred_check_branch
    %20 = sbr.rel (0) target = $region21
  $region20: #{lenet5_forward.4} parent=0 // pred_region
    _
  $region21: #{lenet5_forward.4} parent=0 // pred_fallthru
    _
  // Predicated region
  $region22: #{lenet5_forward.4} parent=0 // pred_check
    _
  $region23: #{lenet5_forward.4} parent=0 // pred_check_branch
    %22 = sbr.rel (0) target = $region25
  $region24: #{lenet5_forward.4} parent=0 // pred_region
    _
  $region25: #{lenet5_forward.4} parent=0 // pred_fallthru
    _
  %v24 = vld [vmem:[%s4] sm:$0xff]
  %v25 = vld [vmem:[%s4 + $0x8] sm:$0xff]
  %v26 = vld [vmem:[%s0] sm:$0xf]
  %v27 = vld [vmem:[%s0 + $0x4] sm:$0xf]
  %v28 = vld [vmem:[%s0 + $0x8] sm:$0xf]
  %v29 = vld [vmem:[%s0 + $0xc] sm:$0xf]
  %v30 = vld [vmem:[%s0 + $0x10] sm:$0xf]
  %v31 = vld [vmem:[%s0 + $0x14] sm:$0xf]
  %v32 = vld [vmem:[%s0 + $0x18] sm:$0xf]
  %v33 = vld [vmem:[%s0 + $0x1c] sm:$0xf]
  %v34 = vld [vmem:[%s0 + $0x20] sm:$0xf]
  %v35 = vld [vmem:[%s0 + $0x24] sm:$0xf]
  %v36 = vld [vmem:[%s0 + $0x28] sm:$0xf]
  %v37 = vld [vmem:[%s0 + $0x2c] sm:$0xf]
  %v38 = vld [vmem:[%s0 + $0x30] sm:$0xf]
  %v39 = vld [vmem:[%s0 + $0x34] sm:$0xf]
  %v40 = vld [vmem:[%s0 + $0x38] sm:$0xf]
  %v41 = vld [vmem:[%s0 + $0x3c] sm:$0xf]
  %v42 = vld [vmem:[%s0 + $0x40] sm:$0xf]
  %v43 = vld [vmem:[%s0 + $0x44] sm:$0xf]
  %v44 = vld [vmem:[%s0 + $0x48] sm:$0x7]
  %v47 = vunpack.c.l.b16 %v24
  %v48 = vunpack.c.h.b16 %v24
  %v49 = vunpack.c.l.b16 %v25
  %v50 = vunpack.c.h.b16 %v25
  %v51 = vpack.c.b16 %v49, %v47
  %v52 = vpack.c.b16 %v50, %v48
  %v73 = vunpack.c.l.b16 %v26
  %v74 = vunpack.c.l.b16 %v27
  %v75 = vunpack.c.l.b16 %v28
  %v76 = vunpack.c.l.b16 %v29
  %v77 = vunpack.c.l.b16 %v30
  %v78 = vunpack.c.l.b16 %v31
  %v79 = vunpack.c.l.b16 %v32
  %v80 = vunpack.c.l.b16 %v33
  %v81 = vunpack.c.l.b16 %v34
  %v82 = vunpack.c.l.b16 %v35
  %v83 = vunpack.c.l.b16 %v36
  %v84 = vunpack.c.l.b16 %v37
  %v85 = vunpack.c.l.b16 %v38
  %v86 = vunpack.c.l.b16 %v39
  %v87 = vunpack.c.l.b16 %v40
  %v88 = vunpack.c.l.b16 %v41
  %v89 = vunpack.c.l.b16 %v42
  %v90 = vunpack.c.l.b16 %v43
  %v91 = vunpack.c.l.b16 %v44
  %v92 = vpack.c.b16 %v74, %v73
  %v93 = vpack.c.b16 %v76, %v75
  %v94 = vpack.c.b16 %v78, %v77
  %v95 = vpack.c.b16 %v80, %v79
  %v96 = vpack.c.b16 %v82, %v81
  %v97 = vpack.c.b16 %v84, %v83
  %v98 = vpack.c.b16 %v86, %v85
  %v99 = vpack.c.b16 %v88, %v87
  %v100 = vpack.c.b16 %v90, %v89
  %v101 = vpack.c.b16 %v91, %v91
  %vm111 = vcmask 179200
  %v113 = vsel %vm111, %v52, 0
  %vm115 = vcmask 1042432
  %v117 = vsel %vm115, %v101, 0
  %119 = vmatprep.subr.bf16.mxu0 0
  %120 = vmatpush1.bf16.msra.mxu0 %v92
  %121 = vmatprep.subr.bf16.mxu0 0
  %122 = vmatpush1.bf16.msra.mxu0 %v93
  %123 = vmatprep.subr.bf16.mxu0 0
  %124 = vmatpush1.bf16.msra.mxu0 %v94
  %125 = vmatprep.subr.bf16.mxu0 0
  %126 = vmatpush1.bf16.msra.mxu0 %v95
  %127 = vmatprep.subr.bf16.mxu0 0
  %128 = vmatpush1.bf16.msra.mxu0 %v96
  %129 = vmatprep.subr.bf16.mxu0 0
  %130 = vmatpush1.bf16.msra.mxu0 %v97
  %131 = vmatprep.subr.bf16.mxu0 0
  %132 = vmatpush1.bf16.msra.mxu0 %v98
  %133 = vmatprep.subr.bf16.mxu0 0
  %134 = vmatpush1.bf16.msra.mxu0 %v99
  %135 = vmatprep.subr.bf16.mxu0 0
  %136 = vmatpush1.bf16.msra.mxu0 %v100
  %137 = vmatprep.subr.bf16.mxu0 0
  %138 = vmatpush1.bf16.msra.mxu0 %v117
  %139 = vmatprep.subr.bf16.mxu0 0
  %140 = vmatpush1.bf16.msra.mxu0 0
  %141 = vmatprep.subr.bf16.mxu0 0
  %142 = vmatpush1.bf16.msra.mxu0 0
  %143 = vmatprep.subr.bf16.mxu0 0
  %144 = vmatpush1.bf16.msra.mxu0 0
  %145 = vmatprep.subr.bf16.mxu0 0
  %146 = vmatpush1.bf16.msra.mxu0 0
  %147 = vmatprep.subr.bf16.mxu0 0
  %148 = vmatpush1.bf16.msra.mxu0 0
  %149 = vmatprep.subr.bf16.mxu0 0
  %150 = vmatpush1.bf16.msra.mxu0 0
  %151 = vmatprep.mubr.bf16.mxu0 %v113
  %152 = vmatmul.mubr.bf16.gmra.mrb[0].mxu0 %v51
  %v153 = vpop.f32.mrb[0].mxu0
  %v154 = vadd.f32 0.0, %v153
  %v155 = vpop.f32.mrb[0].mxu0
  %v156 = vpop.f32.mrb[0].mxu0
  %v157 = vadd.f32 0.0, %v156
  %v158 = vpop.f32.mrb[0].mxu0
  %159 = vdwg.mxu0
  %v160 = vld [vmem:[%s1] sm:$0xf]
  %v161 = vld [vmem:[%s1 + $0x4] sm:$0xf]
  %v162 = vld [vmem:[%s1 + $0x8] sm:$0xf]
  %v163 = vld [vmem:[%s1 + $0xc] sm:$0xf]
  %v164 = vld [vmem:[%s1 + $0x10] sm:$0xf]
  %v165 = vld [vmem:[%s1 + $0x14] sm:$0xf]
  %v166 = vld [vmem:[%s1 + $0x18] sm:$0xf]
  %v167 = vld [vmem:[%s1 + $0x1c] sm:$0xf]
  %v168 = vld [vmem:[%s1 + $0x20] sm:$0xf]
  %v169 = vld [vmem:[%s1 + $0x24] sm:$0xf]
  %v170 = vld [vmem:[%s1 + $0x28] sm:$0xf]
  %v171 = vld [vmem:[%s1 + $0x2c] sm:$0xf]
  %v172 = vld [vmem:[%s1 + $0x30] sm:$0xf]
  %v173 = vld [vmem:[%s1 + $0x34] sm:$0xf]
  %v174 = vld [vmem:[%s1 + $0x38] sm:$0xf]
  %v175 = vld [vmem:[%s1 + $0x3c] sm:$0xf]
  %v176 = vld [vmem:[%s1 + $0x40] sm:$0xf]
  %v177 = vld [vmem:[%s1 + $0x44] sm:$0xf]
  %v178 = vld [vmem:[%s1 + $0x48] sm:$0x7]
  %v198 = vunpack.c.l.b16 %v160
  %v199 = vunpack.c.l.b16 %v161
  %v200 = vunpack.c.l.b16 %v162
  %v201 = vunpack.c.l.b16 %v163
  %v202 = vunpack.c.l.b16 %v164
  %v203 = vunpack.c.l.b16 %v165
  %v204 = vunpack.c.l.b16 %v166
  %v205 = vunpack.c.l.b16 %v167
  %v206 = vunpack.c.l.b16 %v168
  %v207 = vunpack.c.l.b16 %v169
  %v208 = vunpack.c.l.b16 %v170
  %v209 = vunpack.c.l.b16 %v171
  %v210 = vunpack.c.l.b16 %v172
  %v211 = vunpack.c.l.b16 %v173
  %v212 = vunpack.c.l.b16 %v174
  %v213 = vunpack.c.l.b16 %v175
  %v214 = vunpack.c.l.b16 %v176
  %v215 = vunpack.c.l.b16 %v177
  %v216 = vunpack.c.l.b16 %v178
  %v217 = vpack.c.b16 %v199, %v198
  %v218 = vpack.c.b16 %v201, %v200
  %v219 = vpack.c.b16 %v203, %v202
  %v220 = vpack.c.b16 %v205, %v204
  %v221 = vpack.c.b16 %v207, %v206
  %v222 = vpack.c.b16 %v209, %v208
  %v223 = vpack.c.b16 %v211, %v210
  %v224 = vpack.c.b16 %v213, %v212
  %v225 = vpack.c.b16 %v215, %v214
  %v226 = vpack.c.b16 %v216, %v216
  %v237 = vsel %vm115, %v226, 0
  %239 = vmatprep.subr.bf16.mxu0 0
  %240 = vmatpush1.bf16.msra.mxu0 %v217
  %241 = vmatprep.subr.bf16.mxu0 0
  %242 = vmatpush1.bf16.msra.mxu0 %v218
  %243 = vmatprep.subr.bf16.mxu0 0
  %244 = vmatpush1.bf16.msra.mxu0 %v219
  %245 = vmatprep.subr.bf16.mxu0 0
  %246 = vmatpush1.bf16.msra.mxu0 %v220
  %247 = vmatprep.subr.bf16.mxu0 0
  %248 = vmatpush1.bf16.msra.mxu0 %v221
  %249 = vmatprep.subr.bf16.mxu0 0
  %250 = vmatpush1.bf16.msra.mxu0 %v222
  %251 = vmatprep.subr.bf16.mxu0 0
  %252 = vmatpush1.bf16.msra.mxu0 %v223
  %253 = vmatprep.subr.bf16.mxu0 0
  %254 = vmatpush1.bf16.msra.mxu0 %v224
  %255 = vmatprep.subr.bf16.mxu0 0
  %256 = vmatpush1.bf16.msra.mxu0 %v225
  %257 = vmatprep.subr.bf16.mxu0 0
  %258 = vmatpush1.bf16.msra.mxu0 %v237
  %259 = vmatprep.subr.bf16.mxu0 0
  %260 = vmatpush1.bf16.msra.mxu0 0
  %261 = vmatprep.subr.bf16.mxu0 0
  %262 = vmatpush1.bf16.msra.mxu0 0
  %263 = vmatprep.subr.bf16.mxu0 0
  %264 = vmatpush1.bf16.msra.mxu0 0
  %265 = vmatprep.subr.bf16.mxu0 0
  %266 = vmatpush1.bf16.msra.mxu0 0
  %267 = vmatprep.subr.bf16.mxu0 0
  %268 = vmatpush1.bf16.msra.mxu0 0
  %269 = vmatprep.subr.bf16.mxu0 0
  %270 = vmatpush1.bf16.msra.mxu0 0
  %271 = vmatprep.mubr.bf16.mxu0 %v113
  %272 = vmatmul.mubr.bf16.gmra.mrb[0].mxu0 %v51
  %v273 = vpop.f32.mrb[0].mxu0
  %v274 = vadd.f32 0.0, %v273
  %v275 = vpop.f32.mrb[0].mxu0
  %v276 = vpop.f32.mrb[0].mxu0
  %v277 = vadd.f32 0.0, %v276
  %v278 = vpop.f32.mrb[0].mxu0
  %279 = vdwg.mxu0
  %v280 = vmax.f32 %v154, %v274
  %v281 = vmax.f32 %v157, %v277
  %v282 = vld [vmem:[%s2] sm:$0xf]
  %v283 = vld [vmem:[%s2 + $0x4] sm:$0xf]
  %v284 = vld [vmem:[%s2 + $0x8] sm:$0xf]
  %v285 = vld [vmem:[%s2 + $0xc] sm:$0xf]
  %v286 = vld [vmem:[%s2 + $0x10] sm:$0xf]
  %v287 = vld [vmem:[%s2 + $0x14] sm:$0xf]
  %v288 = vld [vmem:[%s2 + $0x18] sm:$0xf]
  %v289 = vld [vmem:[%s2 + $0x1c] sm:$0xf]
  %v290 = vld [vmem:[%s2 + $0x20] sm:$0xf]
  %v291 = vld [vmem:[%s2 + $0x24] sm:$0xf]
  %v292 = vld [vmem:[%s2 + $0x28] sm:$0xf]
  %v293 = vld [vmem:[%s2 + $0x2c] sm:$0xf]
  %v294 = vld [vmem:[%s2 + $0x30] sm:$0xf]
  %v295 = vld [vmem:[%s2 + $0x34] sm:$0xf]
  %v296 = vld [vmem:[%s2 + $0x38] sm:$0xf]
  %v297 = vld [vmem:[%s2 + $0x3c] sm:$0xf]
  %v298 = vld [vmem:[%s2 + $0x40] sm:$0xf]
  %v299 = vld [vmem:[%s2 + $0x44] sm:$0xf]
  %v300 = vld [vmem:[%s2 + $0x48] sm:$0x7]
  %v320 = vunpack.c.l.b16 %v282
  %v321 = vunpack.c.l.b16 %v283
  %v322 = vunpack.c.l.b16 %v284
  %v323 = vunpack.c.l.b16 %v285
  %v324 = vunpack.c.l.b16 %v286
  %v325 = vunpack.c.l.b16 %v287
  %v326 = vunpack.c.l.b16 %v288
  %v327 = vunpack.c.l.b16 %v289
  %v328 = vunpack.c.l.b16 %v290
  %v329 = vunpack.c.l.b16 %v291
  %v330 = vunpack.c.l.b16 %v292
  %v331 = vunpack.c.l.b16 %v293
  %v332 = vunpack.c.l.b16 %v294
  %v333 = vunpack.c.l.b16 %v295
  %v334 = vunpack.c.l.b16 %v296
  %v335 = vunpack.c.l.b16 %v297
  %v336 = vunpack.c.l.b16 %v298
  %v337 = vunpack.c.l.b16 %v299
  %v338 = vunpack.c.l.b16 %v300
  %v339 = vpack.c.b16 %v321, %v320
  %v340 = vpack.c.b16 %v323, %v322
  %v341 = vpack.c.b16 %v325, %v324
  %v342 = vpack.c.b16 %v327, %v326
  %v343 = vpack.c.b16 %v329, %v328
  %v344 = vpack.c.b16 %v331, %v330
  %v345 = vpack.c.b16 %v333, %v332
  %v346 = vpack.c.b16 %v335, %v334
  %v347 = vpack.c.b16 %v337, %v336
  %v348 = vpack.c.b16 %v338, %v338
  %v359 = vsel %vm115, %v348, 0
  %361 = vmatprep.subr.bf16.mxu0 0
  %362 = vmatpush1.bf16.msra.mxu0 %v339
  %363 = vmatprep.subr.bf16.mxu0 0
  %364 = vmatpush1.bf16.msra.mxu0 %v340
  %365 = vmatprep.subr.bf16.mxu0 0
  %366 = vmatpush1.bf16.msra.mxu0 %v341
  %367 = vmatprep.subr.bf16.mxu0 0
  %368 = vmatpush1.bf16.msra.mxu0 %v342
  %369 = vmatprep.subr.bf16.mxu0 0
  %370 = vmatpush1.bf16.msra.mxu0 %v343
  %371 = vmatprep.subr.bf16.mxu0 0
  %372 = vmatpush1.bf16.msra.mxu0 %v344
  %373 = vmatprep.subr.bf16.mxu0 0
  %374 = vmatpush1.bf16.msra.mxu0 %v345
  %375 = vmatprep.subr.bf16.mxu0 0
  %376 = vmatpush1.bf16.msra.mxu0 %v346
  %377 = vmatprep.subr.bf16.mxu0 0
  %378 = vmatpush1.bf16.msra.mxu0 %v347
  %379 = vmatprep.subr.bf16.mxu0 0
  %380 = vmatpush1.bf16.msra.mxu0 %v359
  %381 = vmatprep.subr.bf16.mxu0 0
  %382 = vmatpush1.bf16.msra.mxu0 0
  %383 = vmatprep.subr.bf16.mxu0 0
  %384 = vmatpush1.bf16.msra.mxu0 0
  %385 = vmatprep.subr.bf16.mxu0 0
  %386 = vmatpush1.bf16.msra.mxu0 0
  %387 = vmatprep.subr.bf16.mxu0 0
  %388 = vmatpush1.bf16.msra.mxu0 0
  %389 = vmatprep.subr.bf16.mxu0 0
  %390 = vmatpush1.bf16.msra.mxu0 0
  %391 = vmatprep.subr.bf16.mxu0 0
  %392 = vmatpush1.bf16.msra.mxu0 0
  %393 = vmatprep.mubr.bf16.mxu0 %v113
  %394 = vmatmul.mubr.bf16.gmra.mrb[0].mxu0 %v51
  %v395 = vpop.f32.mrb[0].mxu0
  %v396 = vadd.f32 0.0, %v395
  %v397 = vpop.f32.mrb[0].mxu0
  %v398 = vpop.f32.mrb[0].mxu0
  %v399 = vadd.f32 0.0, %v398
  %v400 = vpop.f32.mrb[0].mxu0
  %401 = vdwg.mxu0
  %v402 = vmax.f32 %v280, %v396
  %v403 = vmax.f32 %v281, %v399
  %v404 = vld [vmem:[%s3] sm:$0xf]
  %v405 = vld [vmem:[%s3 + $0x4] sm:$0xf]
  %v406 = vld [vmem:[%s3 + $0x8] sm:$0xf]
  %v407 = vld [vmem:[%s3 + $0xc] sm:$0xf]
  %v408 = vld [vmem:[%s3 + $0x10] sm:$0xf]
  %v409 = vld [vmem:[%s3 + $0x14] sm:$0xf]
  %v410 = vld [vmem:[%s3 + $0x18] sm:$0xf]
  %v411 = vld [vmem:[%s3 + $0x1c] sm:$0xf]
  %v412 = vld [vmem:[%s3 + $0x20] sm:$0xf]
  %v413 = vld [vmem:[%s3 + $0x24] sm:$0xf]
  %v414 = vld [vmem:[%s3 + $0x28] sm:$0xf]
  %v415 = vld [vmem:[%s3 + $0x2c] sm:$0xf]
  %v416 = vld [vmem:[%s3 + $0x30] sm:$0xf]
  %v417 = vld [vmem:[%s3 + $0x34] sm:$0xf]
  %v418 = vld [vmem:[%s3 + $0x38] sm:$0xf]
  %v419 = vld [vmem:[%s3 + $0x3c] sm:$0xf]
  %v420 = vld [vmem:[%s3 + $0x40] sm:$0xf]
  %v421 = vld [vmem:[%s3 + $0x44] sm:$0xf]
  %v422 = vld [vmem:[%s3 + $0x48] sm:$0x7]
  %v442 = vunpack.c.l.b16 %v404
  %v443 = vunpack.c.l.b16 %v405
  %v444 = vunpack.c.l.b16 %v406
  %v445 = vunpack.c.l.b16 %v407
  %v446 = vunpack.c.l.b16 %v408
  %v447 = vunpack.c.l.b16 %v409
  %v448 = vunpack.c.l.b16 %v410
  %v449 = vunpack.c.l.b16 %v411
  %v450 = vunpack.c.l.b16 %v412
  %v451 = vunpack.c.l.b16 %v413
  %v452 = vunpack.c.l.b16 %v414
  %v453 = vunpack.c.l.b16 %v415
  %v454 = vunpack.c.l.b16 %v416
  %v455 = vunpack.c.l.b16 %v417
  %v456 = vunpack.c.l.b16 %v418
  %v457 = vunpack.c.l.b16 %v419
  %v458 = vunpack.c.l.b16 %v420
  %v459 = vunpack.c.l.b16 %v421
  %v460 = vunpack.c.l.b16 %v422
  %v461 = vpack.c.b16 %v443, %v442
  %v462 = vpack.c.b16 %v445, %v444
  %v463 = vpack.c.b16 %v447, %v446
  %v464 = vpack.c.b16 %v449, %v448
  %v465 = vpack.c.b16 %v451, %v450
  %v466 = vpack.c.b16 %v453, %v452
  %v467 = vpack.c.b16 %v455, %v454
  %v468 = vpack.c.b16 %v457, %v456
  %v469 = vpack.c.b16 %v459, %v458
  %v470 = vpack.c.b16 %v460, %v460
  %v481 = vsel %vm115, %v470, 0
  %483 = vmatprep.subr.bf16.mxu0 0
  %484 = vmatpush1.bf16.msra.mxu0 %v461
  %485 = vmatprep.subr.bf16.mxu0 0
  %486 = vmatpush1.bf16.msra.mxu0 %v462
  %487 = vmatprep.subr.bf16.mxu0 0
  %488 = vmatpush1.bf16.msra.mxu0 %v463
  %489 = vmatprep.subr.bf16.mxu0 0
  %490 = vmatpush1.bf16.msra.mxu0 %v464
  %491 = vmatprep.subr.bf16.mxu0 0
  %492 = vmatpush1.bf16.msra.mxu0 %v465
  %493 = vmatprep.subr.bf16.mxu0 0
  %494 = vmatpush1.bf16.msra.mxu0 %v466
  %495 = vmatprep.subr.bf16.mxu0 0
  %496 = vmatpush1.bf16.msra.mxu0 %v467
  %497 = vmatprep.subr.bf16.mxu0 0
  %498 = vmatpush1.bf16.msra.mxu0 %v468
  %499 = vmatprep.subr.bf16.mxu0 0
  %500 = vmatpush1.bf16.msra.mxu0 %v469
  %501 = vmatprep.subr.bf16.mxu0 0
  %502 = vmatpush1.bf16.msra.mxu0 %v481
  %503 = vmatprep.subr.bf16.mxu0 0
  %504 = vmatpush1.bf16.msra.mxu0 0
  %505 = vmatprep.subr.bf16.mxu0 0
  %506 = vmatpush1.bf16.msra.mxu0 0
  %507 = vmatprep.subr.bf16.mxu0 0
  %508 = vmatpush1.bf16.msra.mxu0 0
  %509 = vmatprep.subr.bf16.mxu0 0
  %510 = vmatpush1.bf16.msra.mxu0 0
  %511 = vmatprep.subr.bf16.mxu0 0
  %512 = vmatpush1.bf16.msra.mxu0 0
  %513 = vmatprep.subr.bf16.mxu0 0
  %514 = vmatpush1.bf16.msra.mxu0 0
  %515 = vmatprep.mubr.bf16.mxu0 %v113
  %516 = vmatmul.mubr.bf16.gmra.mrb[0].mxu0 %v51
  %v517 = vpop.f32.mrb[0].mxu0
  %v518 = vadd.f32 0.0, %v517
  %v519 = vpop.f32.mrb[0].mxu0
  %v520 = vpop.f32.mrb[0].mxu0
  %v521 = vadd.f32 0.0, %v520
  %v522 = vpop.f32.mrb[0].mxu0
  %523 = vdwg.mxu0
  %v524 = vmax.f32 %v402, %v518
  %v525 = vmax.f32 %v403, %v521
  %v526 = vld [vmem:[%s5] sm:$0xff]
  %v527 = vld [vmem:[%s5 + $0x8] sm:$0xff]
  %529 = vset.pattern.permute.xlu0 0
  %530 = vperm.xlu0 %529, %v526
  %v531 = vpop.permute.xlu0 %530
  %534 = vset.pattern.permute.xlu0 0
  %535 = vperm.xlu0 %534, %v527
  %v536 = vpop.permute.xlu0 %535
  %v538 = vadd.f32 %v524, %v531
  %v539 = vadd.f32 %v525, %v536
  %v540 = vmax.f32 %v538, 0.0
  %v541 = vmax.f32 %v539, 0.0
  %v542 = vpack.c.bf16 %v541, %v540
  %v544 = vunpack.c.l.b16 %v542
  %v545 = vunpack.c.h.b16 %v542
  %v546 = vpack.c.b16 %v544, %v544
  %v547 = vpack.c.b16 %v545, %v545
  %550 = vst [vmem:[%s6] sm:$0xf] %v546
  %551 = vst [vmem:[%s6 + $0x4] sm:$0xf] %v547
  // Predicated region
  $region26: #{lenet5_forward.4} parent=0 // pred_check
    _
  $region27: #{lenet5_forward.4} parent=0 // pred_check_branch
    %553 = sbr.rel (0) target = $region29
  $region28: #{lenet5_forward.4} parent=0 // pred_region
    _
  $region29: #{lenet5_forward.4} parent=0 // pred_fallthru
    _
  // Predicated region
  $region30: #{lenet5_forward.4} parent=0 // pred_check
    _
  $region31: #{lenet5_forward.4} parent=0 // pred_check_branch
    %555 = sbr.rel (0) target = $region33
  $region32: #{lenet5_forward.4} parent=0 // pred_region
    _
  $region33: #{lenet5_forward.4} parent=0 // pred_fallthru
    _

// kernel: lenet5_forward.5
$region0: #{lenet5_forward.5}
  #allocation0 [shape = 'u32[]', space=smem, size = 0x4, offset = 0x4, fixed_abs, tag = 'smem constant byte address 0x4 - core index']
  #allocation1 [shape = 'u32[144,128]{1,0:T(1,128)}', space=vmem, size = 0x12000, scoped, tag = 'internal scratch']
  %s0 = inlined_call_operand.vmem [shape: bf16[2,256], index: 0, kind: input, shape index: {}]
  %s1 = inlined_call_operand.vmem [shape: bf16[256,128], index: 1, kind: input, shape index: {}]
  %s2 = inlined_call_operand.vmem [shape: f32[1,128], index: 2, kind: input, shape index: {}]
  %s3 = inlined_call_operand.vmem [shape: bf16[128,128], index: 3, kind: input, shape index: {}]
  %s4 = inlined_call_operand.vmem [shape: f32[1,128], index: 4, kind: input, shape index: {}]
  %s5 = inlined_call_operand.vmem [shape: bf16[128,128], index: 5, kind: input, shape index: {}]
  %s6 = inlined_call_operand.vmem [shape: f32[1,128], index: 6, kind: input, shape index: {}]
  %s7 = inlined_call_operand.hbm [shape: f32[2,128], index: 7, kind: output, shape index: {}]
  %s8 = sld [smem:[#allocation0]]
  $region38: #{lenet5_forward.5} parent=0
    _
  %s10 = ssub.s32 1, %s8
  %s11 = scalar_select 0, %s10, %s8
  $region1: #{lenet5_forward.5} parent=0
    #allocation2 [shape = 'u8[1024]{0}', space=vmem, size = 0x400, scoped, tag = 'output window, operand 0, single buffered']
    #allocation3 [shape = 's32[1]{0}', space=sflag, size = 0x4, scoped, tag = 'scoped memory for lenet5_forward.5']
    %12 = vsyncpa [#allocation3], 0
    // Predicated region
    $region2: #{lenet5_forward.5} parent=1 // pred_check
      _
    $region3: #{lenet5_forward.5} parent=1 // pred_check_branch
      %14 = sbr.rel (0) target = $region5
    $region4: #{lenet5_forward.5} parent=1 // pred_region
      _
    $region5: #{lenet5_forward.5} parent=1 // pred_fallthru
      _
    // Predicated region
    $region6: #{lenet5_forward.5} parent=1 // pred_check
      _
    $region7: #{lenet5_forward.5} parent=1 // pred_check_branch
      %16 = sbr.rel (0) target = $region9
    $region8: #{lenet5_forward.5} parent=1 // pred_region
      _
    $region9: #{lenet5_forward.5} parent=1 // pred_fallthru
      _
    // Predicated region
    $region10: #{lenet5_forward.5} parent=1 // pred_check
      _
    $region11: #{lenet5_forward.5} parent=1 // pred_check_branch
      %18 = sbr.rel (0) target = $region13
    $region12: #{lenet5_forward.5} parent=1 // pred_region
      _
    $region13: #{lenet5_forward.5} parent=1 // pred_fallthru
      _
    // Predicated region
    $region14: #{lenet5_forward.5} parent=1 // pred_check
      _
    $region15: #{lenet5_forward.5} parent=1 // pred_check_branch
      %20 = sbr.rel (0) target = $region17
    $region16: #{lenet5_forward.5} parent=1 // pred_region
      _
    $region17: #{lenet5_forward.5} parent=1 // pred_fallthru
      _
    // Predicated region
    $region18: #{lenet5_forward.5} parent=1 // pred_check
      _
    $region19: #{lenet5_forward.5} parent=1 // pred_check_branch
      %22 = sbr.rel (0) target = $region21
    $region20: #{lenet5_forward.5} parent=1 // pred_region
      _
    $region21: #{lenet5_forward.5} parent=1 // pred_fallthru
      _
    // Predicated region
    $region22: #{lenet5_forward.5} parent=1 // pred_check
      _
    $region23: #{lenet5_forward.5} parent=1 // pred_check_branch
      %24 = sbr.rel (0) target = $region25
    $region24: #{lenet5_forward.5} parent=1 // pred_region
      _
    $region25: #{lenet5_forward.5} parent=1 // pred_fallthru
      _
    // Predicated region
    $region26: #{lenet5_forward.5} parent=1 // pred_check
      _
    $region27: #{lenet5_forward.5} parent=1 // pred_check_branch
      %26 = sbr.rel (0) target = $region29
    $region28: #{lenet5_forward.5} parent=1 // pred_region
      _
    $region29: #{lenet5_forward.5} parent=1 // pred_fallthru
      _
    %v28 = vld [vmem:[%s0] sm:$0x3]
    %v29 = vld [vmem:[%s1] sm:$0xf]
    %v30 = vld [vmem:[%s1 + $0x4] sm:$0xf]
    %v31 = vld [vmem:[%s1 + $0x8] sm:$0xf]
    %v32 = vld [vmem:[%s1 + $0xc] sm:$0xf]
    %v33 = vld [vmem:[%s1 + $0x10] sm:$0xf]
    %v34 = vld [vmem:[%s1 + $0x14] sm:$0xf]
    %v35 = vld [vmem:[%s1 + $0x18] sm:$0xf]
    %v36 = vld [vmem:[%s1 + $0x1c] sm:$0xf]
    %v37 = vld [vmem:[%s1 + $0x20] sm:$0xf]
    %v38 = vld [vmem:[%s1 + $0x24] sm:$0xf]
    %v39 = vld [vmem:[%s1 + $0x28] sm:$0xf]
    %v40 = vld [vmem:[%s1 + $0x2c] sm:$0xf]
    %v41 = vld [vmem:[%s1 + $0x30] sm:$0xf]
    %v42 = vld [vmem:[%s1 + $0x34] sm:$0xf]
    %v43 = vld [vmem:[%s1 + $0x38] sm:$0xf]
    %v44 = vld [vmem:[%s1 + $0x3c] sm:$0xf]
    %v45 = vld [vmem:[%s1 + $0x40] sm:$0xf]
    %v46 = vld [vmem:[%s1 + $0x44] sm:$0xf]
    %v47 = vld [vmem:[%s1 + $0x48] sm:$0xf]
    %v48 = vld [vmem:[%s1 + $0x4c] sm:$0xf]
    %v49 = vld [vmem:[%s1 + $0x50] sm:$0xf]
    %v50 = vld [vmem:[%s1 + $0x54] sm:$0xf]
    %v51 = vld [vmem:[%s1 + $0x58] sm:$0xf]
    %v52 = vld [vmem:[%s1 + $0x5c] sm:$0xf]
    %v53 = vld [vmem:[%s1 + $0x60] sm:$0xf]
    %v54 = vld [vmem:[%s1 + $0x64] sm:$0xf]
    %v55 = vld [vmem:[%s1 + $0x68] sm:$0xf]
    %v56 = vld [vmem:[%s1 + $0x6c] sm:$0xf]
    %v57 = vld [vmem:[%s1 + $0x70] sm:$0xf]
    %v58 = vld [vmem:[%s1 + $0x74] sm:$0xf]
    %v59 = vld [vmem:[%s1 + $0x78] sm:$0xf]
    %v60 = vld [vmem:[%s1 + $0x7c] sm:$0xf]
    %v61 = vld [vmem:[%s2] sm:$0x1]
    %v63 = vlaneseq
    %v64 = vshrl.u32 %v63, 7
    %v65 = vsub.s32 0, %v64
    %v66 = vrot.slane %v61, %v65
    %v70 = vunpack.c.l.s4 1966171168
    %v71 = vunpack.c.0.s8 %v70
    %v72 = vlaneseq
    %v73 = vshrl.u32 %v72, 7
    %v74 = vsub.s32 %v71, %v73
    %v75 = vrot.slane %v28, %v74
    %v76 = vcombine.high %v75, %v75
    %v78 = vunpack.c.l.s4 1966171168
    %v79 = vunpack.c.0.s8 %v78
    %v80 = vlaneseq
    %v81 = vshrl.u32 %v80, 7
    %v82 = vsub.s32 %v79, %v81
    %v83 = vrot.slane %v75, %v82
    %v85 = vunpack.c.l.s4 1966171168
    %v86 = vunpack.c.0.s8 %v85
    %v87 = vlaneseq
    %v88 = vshrl.u32 %v87, 7
    %v89 = vsub.s32 %v86, %v88
    %v90 = vrot.slane %v76, %v89
    %v125 = vunpack.c.l.b16 %v29
    %v126 = vunpack.c.l.b16 %v30
    %v127 = vunpack.c.l.b16 %v31
    %v128 = vunpack.c.l.b16 %v32
    %v129 = vunpack.c.l.b16 %v33
    %v130 = vunpack.c.l.b16 %v34
    %v131 = vunpack.c.l.b16 %v35
    %v132 = vunpack.c.l.b16 %v36
    %v133 = vunpack.c.l.b16 %v37
    %v134 = vunpack.c.l.b16 %v38
    %v135 = vunpack.c.l.b16 %v39
    %v136 = vunpack.c.l.b16 %v40
    %v137 = vunpack.c.l.b16 %v41
    %v138 = vunpack.c.l.b16 %v42
    %v139 = vunpack.c.l.b16 %v43
    %v140 = vunpack.c.l.b16 %v44
    %v141 = vunpack.c.l.b16 %v45
    %v142 = vunpack.c.l.b16 %v46
    %v143 = vunpack.c.l.b16 %v47
    %v144 = vunpack.c.l.b16 %v48
    %v145 = vunpack.c.l.b16 %v49
    %v146 = vunpack.c.l.b16 %v50
    %v147 = vunpack.c.l.b16 %v51
    %v148 = vunpack.c.l.b16 %v52
    %v149 = vunpack.c.l.b16 %v53
    %v150 = vunpack.c.l.b16 %v54
    %v151 = vunpack.c.l.b16 %v55
    %v152 = vunpack.c.l.b16 %v56
    %v153 = vunpack.c.l.b16 %v57
    %v154 = vunpack.c.l.b16 %v58
    %v155 = vunpack.c.l.b16 %v59
    %v156 = vunpack.c.l.b16 %v60
    %v157 = vpack.c.b16 %v126, %v125
    %v158 = vpack.c.b16 %v128, %v127
    %v159 = vpack.c.b16 %v130, %v129
    %v160 = vpack.c.b16 %v132, %v131
    %v161 = vpack.c.b16 %v134, %v133
    %v162 = vpack.c.b16 %v136, %v135
    %v163 = vpack.c.b16 %v138, %v137
    %v164 = vpack.c.b16 %v140, %v139
    %v165 = vpack.c.b16 %v142, %v141
    %v166 = vpack.c.b16 %v144, %v143
    %v167 = vpack.c.b16 %v146, %v145
    %v168 = vpack.c.b16 %v148, %v147
    %v169 = vpack.c.b16 %v150, %v149
    %v170 = vpack.c.b16 %v152, %v151
    %v171 = vpack.c.b16 %v154, %v153
    %v172 = vpack.c.b16 %v156, %v155
    %189 = vmatprep.subr.bf16.mxu0 0
    %190 = vmatpush1.bf16.msra.mxu0 %v157
    %191 = vmatprep.subr.bf16.mxu0 0
    %192 = vmatpush1.bf16.msra.mxu0 %v158
    %193 = vmatprep.subr.bf16.mxu0 0
    %194 = vmatpush1.bf16.msra.mxu0 %v159
    %195 = vmatprep.subr.bf16.mxu0 0
    %196 = vmatpush1.bf16.msra.mxu0 %v160
    %197 = vmatprep.subr.bf16.mxu0 0
    %198 = vmatpush1.bf16.msra.mxu0 %v161
    %199 = vmatprep.subr.bf16.mxu0 0
    %200 = vmatpush1.bf16.msra.mxu0 %v162
    %201 = vmatprep.subr.bf16.mxu0 0
    %202 = vmatpush1.bf16.msra.mxu0 %v163
    %203 = vmatprep.subr.bf16.mxu0 0
    %204 = vmatpush1.bf16.msra.mxu0 %v164
    %205 = vmatprep.subr.bf16.mxu0 0
    %206 = vmatpush1.bf16.msra.mxu0 %v165
    %207 = vmatprep.subr.bf16.mxu0 0
    %208 = vmatpush1.bf16.msra.mxu0 %v166
    %209 = vmatprep.subr.bf16.mxu0 0
    %210 = vmatpush1.bf16.msra.mxu0 %v167
    %211 = vmatprep.subr.bf16.mxu0 0
    %212 = vmatpush1.bf16.msra.mxu0 %v168
    %213 = vmatprep.subr.bf16.mxu0 0
    %214 = vmatpush1.bf16.msra.mxu0 %v169
    %215 = vmatprep.subr.bf16.mxu0 0
    %216 = vmatpush1.bf16.msra.mxu0 %v170
    %217 = vmatprep.subr.bf16.mxu0 0
    %218 = vmatpush1.bf16.msra.mxu0 %v171
    %219 = vmatprep.subr.bf16.mxu0 0
    %220 = vmatpush1.bf16.msra.mxu0 %v172
    %221 = vmatprep.mubr.bf16.mxu0 %v90
    %222 = vmatmul.mubr.bf16.gmra.mrb[0].mxu0 %v83
    %v223 = vpop.f32.mrb[0].mxu0
    %v224 = vadd.f32 %v66, %v223
    %v225 = vpop.f32.mrb[0].mxu0
    %v226 = vpop.f32.mrb[0].mxu0
    %v227 = vpop.f32.mrb[0].mxu0
    %228 = vdwg.mxu0
    %v229 = vmax.f32 %v224, 0.0
    %v230 = vpack.c.bf16 %v229, %v229
    %v231 = vld [vmem:[%s3] sm:$0xf]
    %v232 = vld [vmem:[%s3 + $0x4] sm:$0xf]
    %v233 = vld [vmem:[%s3 + $0x8] sm:$0xf]
    %v234 = vld [vmem:[%s3 + $0xc] sm:$0xf]
    %v235 = vld [vmem:[%s3 + $0x10] sm:$0xf]
    %v236 = vld [vmem:[%s3 + $0x14] sm:$0xf]
    %v237 = vld [vmem:[%s3 + $0x18] sm:$0xf]
    %v238 = vld [vmem:[%s3 + $0x1c] sm:$0xf]
    %v239 = vld [vmem:[%s3 + $0x20] sm:$0xf]
    %v240 = vld [vmem:[%s3 + $0x24] sm:$0xf]
    %v241 = vld [vmem:[%s3 + $0x28] sm:$0xf]
    %v242 = vld [vmem:[%s3 + $0x2c] sm:$0xf]
    %v243 = vld [vmem:[%s3 + $0x30] sm:$0xf]
    %v244 = vld [vmem:[%s3 + $0x34] sm:$0xf]
    %v245 = vld [vmem:[%s3 + $0x38] sm:$0xf]
    %v246 = vld [vmem:[%s3 + $0x3c] sm:$0xf]
    %v247 = vld [vmem:[%s4] sm:$0x1]
    %v249 = vlaneseq
    %v250 = vshrl.u32 %v249, 7
    %v251 = vsub.s32 0, %v250
    %v252 = vrot.slane %v247, %v251
    %v270 = vunpack.c.l.b16 %v231
    %v271 = vunpack.c.l.b16 %v232
    %v272 = vunpack.c.l.b16 %v233
    %v273 = vunpack.c.l.b16 %v234
    %v274 = vunpack.c.l.b16 %v235
    %v275 = vunpack.c.l.b16 %v236
    %v276 = vunpack.c.l.b16 %v237
    %v277 = vunpack.c.l.b16 %v238
    %v278 = vunpack.c.l.b16 %v239
    %v279 = vunpack.c.l.b16 %v240
    %v280 = vunpack.c.l.b16 %v241
    %v281 = vunpack.c.l.b16 %v242
    %v282 = vunpack.c.l.b16 %v243
    %v283 = vunpack.c.l.b16 %v244
    %v284 = vunpack.c.l.b16 %v245
    %v285 = vunpack.c.l.b16 %v246
    %v286 = vpack.c.b16 %v271, %v270
    %v287 = vpack.c.b16 %v273, %v272
    %v288 = vpack.c.b16 %v275, %v274
    %v289 = vpack.c.b16 %v277, %v276
    %v290 = vpack.c.b16 %v279, %v278
    %v291 = vpack.c.b16 %v281, %v280
    %v292 = vpack.c.b16 %v283, %v282
    %v293 = vpack.c.b16 %v285, %v284
    %302 = vmatprep.subr.bf16.mxu0 0
    %303 = vmatpush1.bf16.msra.mxu0 %v286
    %304 = vmatprep.subr.bf16.mxu0 0
    %305 = vmatpush1.bf16.msra.mxu0 %v287
    %306 = vmatprep.subr.bf16.mxu0 0
    %307 = vmatpush1.bf16.msra.mxu0 %v288
    %308 = vmatprep.subr.bf16.mxu0 0
    %309 = vmatpush1.bf16.msra.mxu0 %v289
    %310 = vmatprep.subr.bf16.mxu0 0
    %311 = vmatpush1.bf16.msra.mxu0 %v290
    %312 = vmatprep.subr.bf16.mxu0 0
    %313 = vmatpush1.bf16.msra.mxu0 %v291
    %314 = vmatprep.subr.bf16.mxu0 0
    %315 = vmatpush1.bf16.msra.mxu0 %v292
    %316 = vmatprep.subr.bf16.mxu0 0
    %317 = vmatpush1.bf16.msra.mxu0 %v293
    %318 = vmatprep.subr.bf16.mxu0 0
    %319 = vmatpush1.bf16.msra.mxu0 0
    %320 = vmatprep.subr.bf16.mxu0 0
    %321 = vmatpush1.bf16.msra.mxu0 0
    %322 = vmatprep.subr.bf16.mxu0 0
    %323 = vmatpush1.bf16.msra.mxu0 0
    %324 = vmatprep.subr.bf16.mxu0 0
    %325 = vmatpush1.bf16.msra.mxu0 0
    %326 = vmatprep.subr.bf16.mxu0 0
    %327 = vmatpush1.bf16.msra.mxu0 0
    %328 = vmatprep.subr.bf16.mxu0 0
    %329 = vmatpush1.bf16.msra.mxu0 0
    %330 = vmatprep.subr.bf16.mxu0 0
    %331 = vmatpush1.bf16.msra.mxu0 0
    %332 = vmatprep.subr.bf16.mxu0 0
    %333 = vmatpush1.bf16.msra.mxu0 0
    %334 = vmatprep.mubr.bf16.mxu0 0
    %335 = vmatmul.mubr.bf16.gmra.mrb[0].mxu0 %v230
    %v336 = vpop.f32.mrb[0].mxu0
    %v337 = vadd.f32 %v252, %v336
    %v338 = vpop.f32.mrb[0].mxu0
    %v339 = vpop.f32.mrb[0].mxu0
    %v340 = vpop.f32.mrb[0].mxu0
    %341 = vdwg.mxu0
    %v342 = vmax.f32 %v337, 0.0
    %v343 = vpack.c.bf16 %v342, %v342
    %v344 = vld [vmem:[%s5] sm:$0xf]
    %v345 = vld [vmem:[%s5 + $0x4] sm:$0xf]
    %v346 = vld [vmem:[%s5 + $0x8] sm:$0xf]
    %v347 = vld [vmem:[%s5 + $0xc] sm:$0xf]
    %v348 = vld [vmem:[%s5 + $0x10] sm:$0xf]
    %v349 = vld [vmem:[%s5 + $0x14] sm:$0xf]
    %v350 = vld [vmem:[%s5 + $0x18] sm:$0xf]
    %v351 = vld [vmem:[%s5 + $0x1c] sm:$0xf]
    %v352 = vld [vmem:[%s5 + $0x20] sm:$0xf]
    %v353 = vld [vmem:[%s5 + $0x24] sm:$0xf]
    %v354 = vld [vmem:[%s5 + $0x28] sm:$0xf]
    %v355 = vld [vmem:[%s5 + $0x2c] sm:$0xf]
    %v356 = vld [vmem:[%s5 + $0x30] sm:$0xf]
    %v357 = vld [vmem:[%s5 + $0x34] sm:$0xf]
    %v358 = vld [vmem:[%s5 + $0x38] sm:$0xf]
    %v359 = vld [vmem:[%s5 + $0x3c] sm:$0xf]
    %v360 = vld [vmem:[%s6] sm:$0x1]
    %v362 = vlaneseq
    %v363 = vshrl.u32 %v362, 7
    %v364 = vsub.s32 0, %v363
    %v365 = vrot.slane %v360, %v364
    %v383 = vunpack.c.l.b16 %v344
    %v384 = vunpack.c.l.b16 %v345
    %v385 = vunpack.c.l.b16 %v346
    %v386 = vunpack.c.l.b16 %v347
    %v387 = vunpack.c.l.b16 %v348
    %v388 = vunpack.c.l.b16 %v349
    %v389 = vunpack.c.l.b16 %v350
    %v390 = vunpack.c.l.b16 %v351
    %v391 = vunpack.c.l.b16 %v352
    %v392 = vunpack.c.l.b16 %v353
    %v393 = vunpack.c.l.b16 %v354
    %v394 = vunpack.c.l.b16 %v355
    %v395 = vunpack.c.l.b16 %v356
    %v396 = vunpack.c.l.b16 %v357
    %v397 = vunpack.c.l.b16 %v358
    %v398 = vunpack.c.l.b16 %v359
    %v399 = vpack.c.b16 %v384, %v383
    %v400 = vpack.c.b16 %v386, %v385
    %v401 = vpack.c.b16 %v388, %v387
    %v402 = vpack.c.b16 %v390, %v389
    %v403 = vpack.c.b16 %v392, %v391
    %v404 = vpack.c.b16 %v394, %v393
    %v405 = vpack.c.b16 %v396, %v395
    %v406 = vpack.c.b16 %v398, %v397
    %415 = vmatprep.subr.bf16.mxu0 0
    %416 = vmatpush1.bf16.msra.mxu0 %v399
    %417 = vmatprep.subr.bf16.mxu0 0
    %418 = vmatpush1.bf16.msra.mxu0 %v400
    %419 = vmatprep.subr.bf16.mxu0 0
    %420 = vmatpush1.bf16.msra.mxu0 %v401
    %421 = vmatprep.subr.bf16.mxu0 0
    %422 = vmatpush1.bf16.msra.mxu0 %v402
    %423 = vmatprep.subr.bf16.mxu0 0
    %424 = vmatpush1.bf16.msra.mxu0 %v403
    %425 = vmatprep.subr.bf16.mxu0 0
    %426 = vmatpush1.bf16.msra.mxu0 %v404
    %427 = vmatprep.subr.bf16.mxu0 0
    %428 = vmatpush1.bf16.msra.mxu0 %v405
    %429 = vmatprep.subr.bf16.mxu0 0
    %430 = vmatpush1.bf16.msra.mxu0 %v406
    %431 = vmatprep.subr.bf16.mxu0 0
    %432 = vmatpush1.bf16.msra.mxu0 0
    %433 = vmatprep.subr.bf16.mxu0 0
    %434 = vmatpush1.bf16.msra.mxu0 0
    %435 = vmatprep.subr.bf16.mxu0 0
    %436 = vmatpush1.bf16.msra.mxu0 0
    %437 = vmatprep.subr.bf16.mxu0 0
    %438 = vmatpush1.bf16.msra.mxu0 0
    %439 = vmatprep.subr.bf16.mxu0 0
    %440 = vmatpush1.bf16.msra.mxu0 0
    %441 = vmatprep.subr.bf16.mxu0 0
    %442 = vmatpush1.bf16.msra.mxu0 0
    %443 = vmatprep.subr.bf16.mxu0 0
    %444 = vmatpush1.bf16.msra.mxu0 0
    %445 = vmatprep.subr.bf16.mxu0 0
    %446 = vmatpush1.bf16.msra.mxu0 0
    %447 = vmatprep.mubr.bf16.mxu0 0
    %448 = vmatmul.mubr.bf16.gmra.mrb[0].mxu0 %v343
    %v449 = vpop.f32.mrb[0].mxu0
    %v450 = vadd.f32 %v365, %v449
    %v451 = vpop.f32.mrb[0].mxu0
    %v452 = vpop.f32.mrb[0].mxu0
    %v453 = vpop.f32.mrb[0].mxu0
    %454 = vdwg.mxu0
    %v455 = vmax.f32 %v450, 0.0
    %456 = vst [vmem:[#allocation2] sm:$0x3] %v455
    // Predicated region
    $region30: #{lenet5_forward.5} parent=1 // pred_check
      _
    $region31: #{lenet5_forward.5} parent=1 // pred_check_branch
      %458 = sbr.rel (0) target = $region33
    $region32: #{lenet5_forward.5} parent=1 // pred_region
      %s460 = ssub.s32 32, 32
      %461 = vsyncadd [#allocation3], %s460
      %s463 = sshll.u32 [#allocation2], 4
      %s464 = int_to_ptr.vmem [resolvable:$true] %s463
      %466 = dma.vmem_to_hbm [thread:$0]  %s464, 32, %s7, [#allocation3]
    $region33: #{lenet5_forward.5} parent=1 // pred_fallthru
      _
    // Predicated region
    $region34: #{lenet5_forward.5} parent=1 // pred_check
      _
    $region35: #{lenet5_forward.5} parent=1 // pred_check_branch
      %468 = sbr.rel (0) target = $region37
    $region36: #{lenet5_forward.5} parent=1 // pred_region
      %469 = dma.done [#allocation3], 32
    $region37: #{lenet5_forward.5} parent=1 // pred_fallthru
      _
    %470 = vsyncpa [#allocation3], 1

</llo_original>
